<compile_context>
chip_gen: v6e
topology: v6e:2x2x1
jax: 0.10.0
libtpu: 0.0.40
codegen_flags: <defaults>
</compile_context>

<pallas_src>
import functools

import jax
import jax.numpy as jnp
from jax.experimental import pallas as pl
from jax.experimental.pallas import tpu as pltpu

EPS = 1e-5          # PyTorch nn.LayerNorm default
NEG_INF = -1e30     # additive mask value for off-block attention scores


# ----------------------------- in-kernel math -----------------------------
def _erf(x):
    # Abramowitz & Stegun 7.1.26 polynomial (|err| < 1.5e-7); exp/mul/add only.
    p = 0.3275911
    a1, a2, a3, a4, a5 = (0.254829592, -0.284496736, 1.421413741,
                          -1.453152027, 1.061405429)
    sign = jnp.where(x >= 0.0, 1.0, -1.0)
    ax = jnp.abs(x)
    t = 1.0 / (1.0 + p * ax)
    poly = ((((a5 * t + a4) * t + a3) * t + a2) * t + a1) * t
    return sign * (1.0 - poly * jnp.exp(-ax * ax))


def _gelu(x):
    # PyTorch nn.GELU() default = exact erf-based GELU
    return 0.5 * x * (1.0 + _erf(x * 0.7071067811865476))


def _layernorm(x, w, b):
    mu = jnp.mean(x, axis=-1, keepdims=True)
    var = jnp.mean((x - mu) ** 2, axis=-1, keepdims=True)
    return (x - mu) * jax.lax.rsqrt(var + EPS) * w + b


def _linear(x, w, b):
    # PyTorch nn.Linear: y = x @ w.T + b, w of shape (out, in).
    y = jax.lax.dot_general(x, w, (((1,), (1,)), ((), ())),
                            preferred_element_type=jnp.float32)
    return y + b


# ------------------------------- fused kernel ------------------------------
def _transformer_kernel(x_ref, bias_ref, wqkv_ref, bqkv_ref, wo_ref,
                        w_up_ref, b_up_ref, w_down_ref, vecs_ref, fnorm_ref,
                        o_ref, xs_ref, *, B, S, H, depth):
    """Grid axis = layer index.  xs_ref holds the running activation (f32)."""
    l = pl.program_id(0)

    @pl.when(l == 0)
    def _():
        xs_ref[...] = x_ref[...].astype(jnp.float32)

    x = xs_ref[...]                     # (N, E) running activation
    N, E = x.shape
    Dh = E // H

    # ---- per-layer packed parameters ----
    vecs = vecs_ref[0]                  # (9, E)
    ln1_w, ln1_b = vecs[0:1, :], vecs[1:2, :]
    ln2_w, ln2_b = vecs[2:3, :], vecs[3:4, :]
    ffn_w, ffn_b = vecs[4:5, :], vecs[5:6, :]
    bo, b2, fb2 = vecs[6:7, :], vecs[7:8, :], vecs[8:9, :]

    w_up = w_up_ref[0]                  # (2, HID, E)  [attn-MLP up, ff-MLP up]
    b_up = b_up_ref[0]                  # (2, HID)
    w_down = w_down_ref[0]              # (2, E, HID)

    # ---------------- AttentionBlock ----------------
    inp = _layernorm(x, ln1_w, ln1_b)
    # Fused QKV projection (wq / bq pre-scaled by 1/sqrt(Dh) at pack time).
    qkv = jax.lax.dot_general(inp, wqkv_ref[0], (((1,), (1,)), ((), ())),
                              preferred_element_type=jnp.float32) + bqkv_ref[0]

    # Stack heads along the sublane axis: rows ordered (h, b, s) -> (H*B*S, Dh).
    def gather_heads(base):
        return jnp.concatenate(
            [qkv[:, base + h * Dh: base + (h + 1) * Dh] for h in range(H)],
            axis=0)

    q_big = gather_heads(0)             # (H*N, Dh)
    k_big = gather_heads(E)
    v_big = gather_heads(2 * E)

    # Block-diagonal attention: one score dot + one context dot on the MXU.
    s = jax.lax.dot_general(q_big, k_big, (((1,), (1,)), ((), ())),
                            preferred_element_type=jnp.float32)   # (H*N, H*N)
    s = s + bias_ref[...]               # 0 within (head,batch) block, -1e30 off
    s = s - jnp.max(s, axis=-1, keepdims=True)
    p = jnp.exp(s)
    p = p / jnp.sum(p, axis=-1, keepdims=True)
    ctx_big = jnp.dot(p, v_big, preferred_element_type=jnp.float32)  # (H*N, Dh)
    ctx = jnp.concatenate(
        [ctx_big[h * N:(h + 1) * N, :] for h in range(H)], axis=-1)  # (N, E)

    attn_out = _linear(ctx, wo_ref[0], bo)
    x1 = x + attn_out                                       # x + attn(ln1(x))
    h1 = _gelu(_linear(_layernorm(x1, ln2_w, ln2_b), w_up[0], b_up[0:1, :]))
    x2 = x1 + _linear(h1, w_down[0], b2)                    # AttentionBlock(x)
    xr = x2 + x                                             # attn(x) + x

    # ---------------- FeedForward ----------------
    h2 = _gelu(_linear(_layernorm(xr, ffn_w, ffn_b), w_up[1], b_up[1:2, :]))
    out = xr + _linear(h2, w_down[1], fb2)                  # ff(x) + x
    # TODO(synk): nn.Dropout layers are identity in eval / p=0 and are omitted.

    xs_ref[...] = out

    @pl.when(l == depth - 1)
    def _():
        fn = fnorm_ref[...]
        o_ref[...] = _layernorm(out, fn[0:1, :], fn[1:2, :]).astype(o_ref.dtype)


# --------------------------- parameter packing ------------------------------
def _pack_params(params, num_heads):
    layers = params["layers"]
    E = params["norm_w"].shape[-1]
    Dh = E // num_heads
    scale = 1.0 / float(Dh) ** 0.5

    def stack(fn):
        return jnp.stack([fn(lp) for lp in layers], axis=0)

    wqkv = stack(lambda lp: jnp.concatenate(
        [lp["wq"] * scale, lp["wk"], lp["wv"]], axis=0))            # (D, 3E, E)
    bqkv = stack(lambda lp: jnp.concatenate(
        [lp["bq"] * scale, lp["bk"], lp["bv"]], axis=-1))           # (D, 1, 3E)
    wo = stack(lambda lp: lp["wo"])                                 # (D, E, E)
    w_up = stack(lambda lp: jnp.stack([lp["w1"], lp["fw1"]], 0))    # (D, 2, HID, E)
    b_up = stack(lambda lp: jnp.concatenate([lp["b1"], lp["fb1"]], 0))  # (D, 2, HID)
    w_down = stack(lambda lp: jnp.stack([lp["w2"], lp["fw2"]], 0))  # (D, 2, E, HID)
    vecs = stack(lambda lp: jnp.concatenate(
        [lp["ln1_w"], lp["ln1_b"], lp["ln2_w"], lp["ln2_b"],
         lp["ffn_w"], lp["ffn_b"], lp["bo"], lp["b2"], lp["fb2"]], axis=0))  # (D, 9, E)
    fnorm = jnp.concatenate([params["norm_w"], params["norm_b"]], axis=0)    # (2, E)
    return dict(wqkv=wqkv, bqkv=bqkv, wo=wo, w_up=w_up, b_up=b_up,
                w_down=w_down, vecs=vecs, fnorm=fnorm)


# --------------------------------- wrapper ----------------------------------
def transformer_forward(x, params, num_heads):
    """x: (S, B, E) seq-first, like PyTorch nn.MultiheadAttention default."""
    S, B, E = x.shape
    H = num_heads
    Dh = E // H
    layers = params["layers"]
    depth = len(layers)
    HID = layers[0]["w1"].shape[0]
    N = B * S
    GS = B * H * S                       # total (head, batch, seq) rows

    x2 = jnp.transpose(x, (1, 0, 2)).reshape(N, E)       # glue: layout change
    packed = _pack_params(params, H)

    # Block-diagonal additive mask: groups of S rows share a (head, batch).
    grp = jnp.arange(GS, dtype=jnp.int32) // S
    bias = jnp.where(grp[:, None] == grp[None, :], 0.0, NEG_INF).astype(jnp.float32)

    call_args = (x2, bias, packed["wqkv"], packed["bqkv"], packed["wo"],
                 packed["w_up"], packed["b_up"], packed["w_down"],
                 packed["vecs"], packed["fnorm"])

    flops_layer = (2 * N * E * 3 * E + 2 * GS * GS * Dh * 2
                   + 2 * N * E * E + 2 * 2 * (2 * N * E * HID))
    cost = pl.CostEstimate(
        flops=int(depth * flops_layer + 8 * N * E),
        transcendentals=int(depth * (GS * GS + 2 * N * HID)),
        bytes_accessed=int(sum(int(a.size) * a.dtype.itemsize for a in call_args)
                           + N * E * 4))

    grid_spec = pltpu.PrefetchScalarGridSpec(
        num_scalar_prefetch=0,
        grid=(depth,),
        in_specs=[
            pl.BlockSpec((N, E), lambda l: (0, 0)),              # x (read @ l==0)
            pl.BlockSpec((GS, GS), lambda l: (0, 0)),            # attention mask
            pl.BlockSpec((1, 3 * E, E), lambda l: (l, 0, 0)),    # fused QKV weight
            pl.BlockSpec((1, 1, 3 * E), lambda l: (l, 0, 0)),    # fused QKV bias
            pl.BlockSpec((1, E, E), lambda l: (l, 0, 0)),        # out-proj weight
            pl.BlockSpec((1, 2, HID, E), lambda l: (l, 0, 0, 0)),  # MLP up weights
            pl.BlockSpec((1, 2, HID), lambda l: (l, 0, 0)),        # MLP up biases
            pl.BlockSpec((1, 2, E, HID), lambda l: (l, 0, 0, 0)),  # MLP down weights
            pl.BlockSpec((1, 9, E), lambda l: (l, 0, 0)),          # LN + small biases
            pl.BlockSpec((2, E), lambda l: (0, 0)),                # final LayerNorm
        ],
        out_specs=pl.BlockSpec((N, E), lambda l: (0, 0)),
        scratch_shapes=[pltpu.VMEM((N, E), jnp.float32)],
    )

    out2 = pl.pallas_call(
        functools.partial(_transformer_kernel, B=B, S=S, H=H, depth=depth),
        out_shape=jax.ShapeDtypeStruct((N, E), x.dtype),
        grid_spec=grid_spec,
        compiler_params=pltpu.CompilerParams(dimension_semantics=("arbitrary",)),
        cost_estimate=cost,
    )(*call_args)

    return jnp.transpose(out2.reshape(B, S, E), (1, 0, 2))


# --------------------------- parameter creation -----------------------------
def init_params(key, embed_dim, depth, num_heads, hidden_dim):
    E, Hd = embed_dim, hidden_dim

    def w(k, o, i):
        return 0.02 * jax.random.normal(k, (o, i), jnp.float32)

    def bvec(k, o):
        return 0.02 * jax.random.normal(k, (1, o), jnp.float32)

    layers = []
    for layer in range(depth):
        ks = jax.random.split(jax.random.fold_in(key, layer), 16)
        layers.append(dict(
            ln1_w=jnp.ones((1, E), jnp.float32), ln1_b=jnp.zeros((1, E), jnp.float32),
            wq=w(ks[0], E, E), bq=bvec(ks[1], E),
            wk=w(ks[2], E, E), bk=bvec(ks[3], E),
            wv=w(ks[4], E, E), bv=bvec(ks[5], E),
            wo=w(ks[6], E, E), bo=bvec(ks[7], E),
            ln2_w=jnp.ones((1, E), jnp.float32), ln2_b=jnp.zeros((1, E), jnp.float32),
            w1=w(ks[8], Hd, E), b1=bvec(ks[9], Hd),
            w2=w(ks[10], E, Hd), b2=bvec(ks[11], E),
            ffn_w=jnp.ones((1, E), jnp.float32), ffn_b=jnp.zeros((1, E), jnp.float32),
            fw1=w(ks[12], Hd, E), fb1=bvec(ks[13], Hd),
            fw2=w(ks[14], E, Hd), fb2=bvec(ks[15], E),
        ))
    return dict(layers=layers,
                norm_w=jnp.ones((1, E), jnp.float32),
                norm_b=jnp.zeros((1, E), jnp.float32))


# ----------------------------- pure-JAX reference ---------------------------
def _reference_forward(x, params, num_heads):
    S, B, E = x.shape
    H = num_heads
    Dh = E // H

    def ln(v, w, b):
        m = v.mean(-1, keepdims=True)
        var = ((v - m) ** 2).mean(-1, keepdims=True)
        return (v - m) / jnp.sqrt(var + EPS) * w.reshape(-1) + b.reshape(-1)

    def lin(v, w, b):
        return v @ w.T + b.reshape(-1)

    def gelu(v):
        return 0.5 * v * (1.0 + jax.scipy.special.erf(v / jnp.sqrt(2.0)))

    for lp in params["layers"]:
        inp = ln(x, lp["ln1_w"], lp["ln1_b"])
        q = lin(inp, lp["wq"], lp["bq"]) / jnp.sqrt(float(Dh))
        k = lin(inp, lp["wk"], lp["bk"])
        v = lin(inp, lp["wv"], lp["bv"])
        qh = q.reshape(S, B, H, Dh).transpose(1, 2, 0, 3)
        kh = k.reshape(S, B, H, Dh).transpose(1, 2, 0, 3)
        vh = v.reshape(S, B, H, Dh).transpose(1, 2, 0, 3)
        s = jnp.einsum('bhsd,bhtd->bhst', qh, kh)
        p = jax.nn.softmax(s, axis=-1)
        ctx = jnp.einsum('bhst,bhtd->bhsd', p, vh)
        ctx = ctx.transpose(2, 0, 1, 3).reshape(S, B, E)
        x1 = x + lin(ctx, lp["wo"], lp["bo"])
        x2 = x1 + lin(gelu(lin(ln(x1, lp["ln2_w"], lp["ln2_b"]),
                               lp["w1"], lp["b1"])), lp["w2"], lp["b2"])
        x = x2 + x
        x = x + lin(gelu(lin(ln(x, lp["ffn_w"], lp["ffn_b"]),
                             lp["fw1"], lp["fb1"])), lp["fw2"], lp["fb2"])
    return ln(x, params["norm_w"], params["norm_b"])


# ---------------------------------- main -----------------------------------
if __name__ == "__main__":
    S, B, E, H, HID, DEPTH = 8, 2, 32, 4, 64, 2
    key = jax.random.PRNGKey(0)
    kx, kp = jax.random.split(key)
    x = jax.random.normal(kx, (S, B, E), jnp.float32)
    params = init_params(kp, E, DEPTH, H, HID)

    out = transformer_forward(x, params, H)
    out = jax.block_until_ready(out)

    ref = _reference_forward(x, params, H)
    assert out.shape == (S, B, E)
    max_err = float(jnp.max(jnp.abs(out - ref)))
    if max_err > 1e-3:
        raise AssertionError(f"Pallas vs reference mismatch: {max_err}")
    print("KERNEL_OK")
</pallas_src>

<mosaic_0001>
module attributes {stable_mosaic.version = 11 : i64} {
  func.func @_transformer_kernel(%arg0: i32, %arg1: memref<16x32xf32, #tpu.memory_space<vmem>>, %arg2: memref<64x64xf32, #tpu.memory_space<vmem>>, %arg3: memref<1x96x32xf32, #tpu.memory_space<vmem>>, %arg4: memref<1x1x96xf32, #tpu.memory_space<vmem>>, %arg5: memref<1x32x32xf32, #tpu.memory_space<vmem>>, %arg6: memref<1x2x64x32xf32, #tpu.memory_space<vmem>>, %arg7: memref<1x2x64xf32, #tpu.memory_space<vmem>>, %arg8: memref<1x2x32x64xf32, #tpu.memory_space<vmem>>, %arg9: memref<1x9x32xf32, #tpu.memory_space<vmem>>, %arg10: memref<2x32xf32, #tpu.memory_space<vmem>>, %arg11: memref<16x32xf32, #tpu.memory_space<vmem>>, %arg12: memref<16x32xf32, #tpu.memory_space<vmem>>) attributes {dimension_semantics = [#tpu.dimension_semantics<arbitrary>], iteration_bounds = array<i64: 2>, scalar_prefetch = 0 : i64, scratch_operands = 1 : i64, tpu.core_type = #tpu.core_type<tc>, window_params = [{pipeline_mode = #tpu.pipeline_mode<synchronous>, transform_indices = @transform_0, window_bounds = array<i64: 16, 32>}, {pipeline_mode = #tpu.pipeline_mode<synchronous>, transform_indices = @transform_1, window_bounds = array<i64: 64, 64>}, {transform_indices = @transform_2, window_bounds = array<i64: 1, 96, 32>}, {transform_indices = @transform_3, window_bounds = array<i64: 1, 1, 96>}, {transform_indices = @transform_4, window_bounds = array<i64: 1, 32, 32>}, {transform_indices = @transform_5, window_bounds = array<i64: 1, 2, 64, 32>}, {transform_indices = @transform_6, window_bounds = array<i64: 1, 2, 64>}, {transform_indices = @transform_7, window_bounds = array<i64: 1, 2, 32, 64>}, {transform_indices = @transform_8, window_bounds = array<i64: 1, 9, 32>}, {pipeline_mode = #tpu.pipeline_mode<synchronous>, transform_indices = @transform_9, window_bounds = array<i64: 2, 32>}, {pipeline_mode = #tpu.pipeline_mode<synchronous>, transform_indices = @transform_10, window_bounds = array<i64: 16, 32>}]} {
    %c0_i32 = arith.constant 0 : i32
    %0 = arith.cmpi eq, %arg0, %c0_i32 : i32
    %1 = arith.extui %0 : i1 to i32
    %c0_i32_0 = arith.constant 0 : i32
    %2 = arith.cmpi ne, %1, %c0_i32_0 : i32
    scf.if %2 {
      %c0_86 = arith.constant 0 : index
      %c0_87 = arith.constant 0 : index
      %244 = vector.load %arg1[%c0_86, %c0_87] : memref<16x32xf32, #tpu.memory_space<vmem>>, vector<16x32xf32>
      %c0_88 = arith.constant 0 : index
      %c0_89 = arith.constant 0 : index
      %245 = vector.load %arg12[%c0_88, %c0_89] : memref<16x32xf32, #tpu.memory_space<vmem>>, vector<16x32xf32>
      tpu.vector_store %arg12[%c0_88, %c0_89], %244 {strides = array<i32>} : memref<16x32xf32, #tpu.memory_space<vmem>>, vector<16x32xf32>,
    } else {
    }
    %c0 = arith.constant 0 : index
    %c0_1 = arith.constant 0 : index
    %3 = vector.load %arg12[%c0, %c0_1] : memref<16x32xf32, #tpu.memory_space<vmem>>, vector<16x32xf32>
    %c0_2 = arith.constant 0 : index
    %c0_3 = arith.constant 0 : index
    %c0_4 = arith.constant 0 : index
    %4 = vector.load %arg9[%c0_2, %c0_3, %c0_4] : memref<1x9x32xf32, #tpu.memory_space<vmem>>, vector<1x9x32xf32>
    %5 = vector.shape_cast %4 : vector<1x9x32xf32> to vector<9x32xf32>
    %6 = vector.extract_strided_slice %5 {offsets = [0, 0], sizes = [1, 32], strides = [1, 1]} : vector<9x32xf32> to vector<1x32xf32>
    %7 = vector.extract_strided_slice %5 {offsets = [1, 0], sizes = [1, 32], strides = [1, 1]} : vector<9x32xf32> to vector<1x32xf32>
    %8 = vector.extract_strided_slice %5 {offsets = [2, 0], sizes = [1, 32], strides = [1, 1]} : vector<9x32xf32> to vector<1x32xf32>
    %9 = vector.extract_strided_slice %5 {offsets = [3, 0], sizes = [1, 32], strides = [1, 1]} : vector<9x32xf32> to vector<1x32xf32>
    %10 = vector.extract_strided_slice %5 {offsets = [4, 0], sizes = [1, 32], strides = [1, 1]} : vector<9x32xf32> to vector<1x32xf32>
    %11 = vector.extract_strided_slice %5 {offsets = [5, 0], sizes = [1, 32], strides = [1, 1]} : vector<9x32xf32> to vector<1x32xf32>
    %12 = vector.extract_strided_slice %5 {offsets = [6, 0], sizes = [1, 32], strides = [1, 1]} : vector<9x32xf32> to vector<1x32xf32>
    %13 = vector.extract_strided_slice %5 {offsets = [7, 0], sizes = [1, 32], strides = [1, 1]} : vector<9x32xf32> to vector<1x32xf32>
    %14 = vector.extract_strided_slice %5 {offsets = [8, 0], sizes = [1, 32], strides = [1, 1]} : vector<9x32xf32> to vector<1x32xf32>
    %c0_5 = arith.constant 0 : index
    %c0_6 = arith.constant 0 : index
    %c0_7 = arith.constant 0 : index
    %c0_8 = arith.constant 0 : index
    %15 = vector.load %arg6[%c0_5, %c0_6, %c0_7, %c0_8] : memref<1x2x64x32xf32, #tpu.memory_space<vmem>>, vector<1x2x64x32xf32>
    %16 = vector.shape_cast %15 : vector<1x2x64x32xf32> to vector<2x64x32xf32>
    %c0_9 = arith.constant 0 : index
    %c0_10 = arith.constant 0 : index
    %c0_11 = arith.constant 0 : index
    %17 = vector.load %arg7[%c0_9, %c0_10, %c0_11] : memref<1x2x64xf32, #tpu.memory_space<vmem>>, vector<1x2x64xf32>
    %18 = vector.shape_cast %17 : vector<1x2x64xf32> to vector<2x64xf32>
    %c0_12 = arith.constant 0 : index
    %c0_13 = arith.constant 0 : index
    %c0_14 = arith.constant 0 : index
    %c0_15 = arith.constant 0 : index
    %19 = vector.load %arg8[%c0_12, %c0_13, %c0_14, %c0_15] : memref<1x2x32x64xf32, #tpu.memory_space<vmem>>, vector<1x2x32x64xf32>
    %20 = vector.shape_cast %19 : vector<1x2x32x64xf32> to vector<2x32x64xf32>
    %cst = arith.constant dense<0.000000e+00> : vector<16xf32>
    %21 = vector.multi_reduction <add>, %3, %cst [1] : vector<16x32xf32> to vector<16xf32>
    %22 = vector.shape_cast %21 : vector<16xf32> to vector<16x1xf32>
    %cst_16 = arith.constant 3.200000e+01 : f32
    %23 = vector.broadcast %cst_16 : f32 to vector<16x1xf32>
    %24 = arith.divf %22, %23 : vector<16x1xf32>
    %25 = vector.broadcast %24 : vector<16x1xf32> to vector<16x32xf32>
    %26 = arith.subf %3, %25 : vector<16x32xf32>
    %27 = arith.mulf %26, %26 : vector<16x32xf32>
    %cst_17 = arith.constant dense<0.000000e+00> : vector<16xf32>
    %28 = vector.multi_reduction <add>, %27, %cst_17 [1] : vector<16x32xf32> to vector<16xf32>
    %29 = vector.shape_cast %28 : vector<16xf32> to vector<16x1xf32>
    %cst_18 = arith.constant 3.200000e+01 : f32
    %30 = vector.broadcast %cst_18 : f32 to vector<16x1xf32>
    %31 = arith.divf %29, %30 : vector<16x1xf32>
    %32 = vector.broadcast %24 : vector<16x1xf32> to vector<16x32xf32>
    %33 = arith.subf %3, %32 : vector<16x32xf32>
    %cst_19 = arith.constant 9.99999974E-6 : f32
    %34 = vector.broadcast %cst_19 : f32 to vector<16x1xf32>
    %35 = arith.addf %31, %34 : vector<16x1xf32>
    %36 = math.rsqrt %35 : vector<16x1xf32>
    %37 = vector.broadcast %36 : vector<16x1xf32> to vector<16x32xf32>
    %38 = arith.mulf %33, %37 : vector<16x32xf32>
    %39 = vector.broadcast %6 : vector<1x32xf32> to vector<16x32xf32>
    %40 = arith.mulf %38, %39 : vector<16x32xf32>
    %41 = vector.broadcast %7 : vector<1x32xf32> to vector<16x32xf32>
    %42 = arith.addf %40, %41 : vector<16x32xf32>
    %c0_20 = arith.constant 0 : index
    %c0_21 = arith.constant 0 : index
    %c0_22 = arith.constant 0 : index
    %43 = vector.load %arg3[%c0_20, %c0_21, %c0_22] : memref<1x96x32xf32, #tpu.memory_space<vmem>>, vector<1x96x32xf32>
    %44 = vector.shape_cast %43 : vector<1x96x32xf32> to vector<96x32xf32>
    %cst_23 = arith.constant dense<0.000000e+00> : vector<16x96xf32>
    %45 = tpu.matmul %42, %44, %cst_23 {dimension_numbers = #tpu.dot_dimension_numbers<[1], [1], [0], [0], [0, 0, 1, 0], [], []>} : vector<16x32xf32>, vector<96x32xf32>, vector<16x96xf32> -> vector<16x96xf32>
    %c0_24 = arith.constant 0 : index
    %c0_25 = arith.constant 0 : index
    %c0_26 = arith.constant 0 : index
    %46 = vector.load %arg4[%c0_24, %c0_25, %c0_26] : memref<1x1x96xf32, #tpu.memory_space<vmem>>, vector<1x1x96xf32>
    %47 = vector.shape_cast %46 : vector<1x1x96xf32> to vector<1x96xf32>
    %48 = vector.broadcast %47 : vector<1x96xf32> to vector<16x96xf32>
    %49 = arith.addf %45, %48 : vector<16x96xf32>
    %50 = vector.extract_strided_slice %49 {offsets = [0, 0], sizes = [16, 8], strides = [1, 1]} : vector<16x96xf32> to vector<16x8xf32>
    %51 = vector.extract_strided_slice %49 {offsets = [0, 8], sizes = [16, 8], strides = [1, 1]} : vector<16x96xf32> to vector<16x8xf32>
    %52 = vector.extract_strided_slice %49 {offsets = [0, 16], sizes = [16, 8], strides = [1, 1]} : vector<16x96xf32> to vector<16x8xf32>
    %53 = vector.extract_strided_slice %49 {offsets = [0, 24], sizes = [16, 8], strides = [1, 1]} : vector<16x96xf32> to vector<16x8xf32>
    %54 = tpu.concatenate %50, %51, %52, %53 in 0 : vector<16x8xf32>, vector<16x8xf32>, vector<16x8xf32>, vector<16x8xf32> -> vector<64x8xf32>
    %55 = vector.extract_strided_slice %49 {offsets = [0, 32], sizes = [16, 8], strides = [1, 1]} : vector<16x96xf32> to vector<16x8xf32>
    %56 = vector.extract_strided_slice %49 {offsets = [0, 40], sizes = [16, 8], strides = [1, 1]} : vector<16x96xf32> to vector<16x8xf32>
    %57 = vector.extract_strided_slice %49 {offsets = [0, 48], sizes = [16, 8], strides = [1, 1]} : vector<16x96xf32> to vector<16x8xf32>
    %58 = vector.extract_strided_slice %49 {offsets = [0, 56], sizes = [16, 8], strides = [1, 1]} : vector<16x96xf32> to vector<16x8xf32>
    %59 = tpu.concatenate %55, %56, %57, %58 in 0 : vector<16x8xf32>, vector<16x8xf32>, vector<16x8xf32>, vector<16x8xf32> -> vector<64x8xf32>
    %60 = vector.extract_strided_slice %49 {offsets = [0, 64], sizes = [16, 8], strides = [1, 1]} : vector<16x96xf32> to vector<16x8xf32>
    %61 = vector.extract_strided_slice %49 {offsets = [0, 72], sizes = [16, 8], strides = [1, 1]} : vector<16x96xf32> to vector<16x8xf32>
    %62 = vector.extract_strided_slice %49 {offsets = [0, 80], sizes = [16, 8], strides = [1, 1]} : vector<16x96xf32> to vector<16x8xf32>
    %63 = vector.extract_strided_slice %49 {offsets = [0, 88], sizes = [16, 8], strides = [1, 1]} : vector<16x96xf32> to vector<16x8xf32>
    %64 = tpu.concatenate %60, %61, %62, %63 in 0 : vector<16x8xf32>, vector<16x8xf32>, vector<16x8xf32>, vector<16x8xf32> -> vector<64x8xf32>
    %cst_27 = arith.constant dense<0.000000e+00> : vector<64x64xf32>
    %65 = tpu.matmul %54, %59, %cst_27 {dimension_numbers = #tpu.dot_dimension_numbers<[1], [1], [0], [0], [0, 0, 1, 0], [], []>} : vector<64x8xf32>, vector<64x8xf32>, vector<64x64xf32> -> vector<64x64xf32>
    %c0_28 = arith.constant 0 : index
    %c0_29 = arith.constant 0 : index
    %66 = vector.load %arg2[%c0_28, %c0_29] : memref<64x64xf32, #tpu.memory_space<vmem>>, vector<64x64xf32>
    %67 = arith.addf %65, %66 : vector<64x64xf32>
    %cst_30 = arith.constant dense<0xFF800000> : vector<64xf32>
    %68 = vector.multi_reduction <maximumf>, %67, %cst_30 [1] : vector<64x64xf32> to vector<64xf32>
    %69 = vector.shape_cast %68 : vector<64xf32> to vector<64x1xf32>
    %70 = vector.broadcast %69 : vector<64x1xf32> to vector<64x64xf32>
    %71 = arith.subf %67, %70 : vector<64x64xf32>
    %72 = math.exp %71 : vector<64x64xf32>
    %cst_31 = arith.constant dense<0.000000e+00> : vector<64xf32>
    %73 = vector.multi_reduction <add>, %72, %cst_31 [1] : vector<64x64xf32> to vector<64xf32>
    %74 = vector.shape_cast %73 : vector<64xf32> to vector<64x1xf32>
    %75 = vector.broadcast %74 : vector<64x1xf32> to vector<64x64xf32>
    %76 = arith.divf %72, %75 : vector<64x64xf32>
    %cst_32 = arith.constant dense<0.000000e+00> : vector<64x8xf32>
    %77 = tpu.matmul %76, %64, %cst_32 {dimension_numbers = #tpu.dot_dimension_numbers<[1], [0], [0], [1], [0, 0, 1, 1], [], []>} : vector<64x64xf32>, vector<64x8xf32>, vector<64x8xf32> -> vector<64x8xf32>
    %78 = vector.extract_strided_slice %77 {offsets = [0, 0], sizes = [16, 8], strides = [1, 1]} : vector<64x8xf32> to vector<16x8xf32>
    %79 = vector.extract_strided_slice %77 {offsets = [16, 0], sizes = [16, 8], strides = [1, 1]} : vector<64x8xf32> to vector<16x8xf32>
    %80 = vector.extract_strided_slice %77 {offsets = [32, 0], sizes = [16, 8], strides = [1, 1]} : vector<64x8xf32> to vector<16x8xf32>
    %81 = vector.extract_strided_slice %77 {offsets = [48, 0], sizes = [16, 8], strides = [1, 1]} : vector<64x8xf32> to vector<16x8xf32>
    %82 = tpu.concatenate %78, %79, %80, %81 in 1 : vector<16x8xf32>, vector<16x8xf32>, vector<16x8xf32>, vector<16x8xf32> -> vector<16x32xf32>
    %c0_33 = arith.constant 0 : index
    %c0_34 = arith.constant 0 : index
    %c0_35 = arith.constant 0 : index
    %83 = vector.load %arg5[%c0_33, %c0_34, %c0_35] : memref<1x32x32xf32, #tpu.memory_space<vmem>>, vector<1x32x32xf32>
    %84 = vector.shape_cast %83 : vector<1x32x32xf32> to vector<32x32xf32>
    %cst_36 = arith.constant dense<0.000000e+00> : vector<16x32xf32>
    %85 = tpu.matmul %82, %84, %cst_36 {dimension_numbers = #tpu.dot_dimension_numbers<[1], [1], [0], [0], [0, 0, 1, 0], [], []>} : vector<16x32xf32>, vector<32x32xf32>, vector<16x32xf32> -> vector<16x32xf32>
    %86 = vector.broadcast %12 : vector<1x32xf32> to vector<16x32xf32>
    %87 = arith.addf %85, %86 : vector<16x32xf32>
    %88 = arith.addf %3, %87 : vector<16x32xf32>
    %cst_37 = arith.constant dense<0.000000e+00> : vector<16xf32>
    %89 = vector.multi_reduction <add>, %88, %cst_37 [1] : vector<16x32xf32> to vector<16xf32>
    %90 = vector.shape_cast %89 : vector<16xf32> to vector<16x1xf32>
    %cst_38 = arith.constant 3.200000e+01 : f32
    %91 = vector.broadcast %cst_38 : f32 to vector<16x1xf32>
    %92 = arith.divf %90, %91 : vector<16x1xf32>
    %93 = vector.broadcast %92 : vector<16x1xf32> to vector<16x32xf32>
    %94 = arith.subf %88, %93 : vector<16x32xf32>
    %95 = arith.mulf %94, %94 : vector<16x32xf32>
    %cst_39 = arith.constant dense<0.000000e+00> : vector<16xf32>
    %96 = vector.multi_reduction <add>, %95, %cst_39 [1] : vector<16x32xf32> to vector<16xf32>
    %97 = vector.shape_cast %96 : vector<16xf32> to vector<16x1xf32>
    %cst_40 = arith.constant 3.200000e+01 : f32
    %98 = vector.broadcast %cst_40 : f32 to vector<16x1xf32>
    %99 = arith.divf %97, %98 : vector<16x1xf32>
    %100 = vector.broadcast %92 : vector<16x1xf32> to vector<16x32xf32>
    %101 = arith.subf %88, %100 : vector<16x32xf32>
    %cst_41 = arith.constant 9.99999974E-6 : f32
    %102 = vector.broadcast %cst_41 : f32 to vector<16x1xf32>
    %103 = arith.addf %99, %102 : vector<16x1xf32>
    %104 = math.rsqrt %103 : vector<16x1xf32>
    %105 = vector.broadcast %104 : vector<16x1xf32> to vector<16x32xf32>
    %106 = arith.mulf %101, %105 : vector<16x32xf32>
    %107 = vector.broadcast %8 : vector<1x32xf32> to vector<16x32xf32>
    %108 = arith.mulf %106, %107 : vector<16x32xf32>
    %109 = vector.broadcast %9 : vector<1x32xf32> to vector<16x32xf32>
    %110 = arith.addf %108, %109 : vector<16x32xf32>
    %111 = vector.extract_strided_slice %16 {offsets = [0, 0, 0], sizes = [1, 64, 32], strides = [1, 1, 1]} : vector<2x64x32xf32> to vector<1x64x32xf32>
    %112 = vector.shape_cast %111 : vector<1x64x32xf32> to vector<64x32xf32>
    %113 = vector.extract_strided_slice %18 {offsets = [0, 0], sizes = [1, 64], strides = [1, 1]} : vector<2x64xf32> to vector<1x64xf32>
    %cst_42 = arith.constant dense<0.000000e+00> : vector<16x64xf32>
    %114 = tpu.matmul %110, %112, %cst_42 {dimension_numbers = #tpu.dot_dimension_numbers<[1], [1], [0], [0], [0, 0, 1, 0], [], []>} : vector<16x32xf32>, vector<64x32xf32>, vector<16x64xf32> -> vector<16x64xf32>
    %115 = vector.broadcast %113 : vector<1x64xf32> to vector<16x64xf32>
    %116 = arith.addf %114, %115 : vector<16x64xf32>
    %cst_43 = arith.constant 5.000000e-01 : f32
    %117 = vector.broadcast %cst_43 : f32 to vector<16x64xf32>
    %118 = arith.mulf %117, %116 : vector<16x64xf32>
    %cst_44 = arith.constant 0.707106769 : f32
    %119 = vector.broadcast %cst_44 : f32 to vector<16x64xf32>
    %120 = arith.mulf %116, %119 : vector<16x64xf32>
    %cst_45 = arith.constant 0.000000e+00 : f32
    %121 = vector.broadcast %cst_45 : f32 to vector<16x64xf32>
    %122 = arith.cmpf oge, %120, %121 : vector<16x64xf32>
    %cst_46 = arith.constant 1.000000e+00 : f32
    %cst_47 = arith.constant -1.000000e+00 : f32
    %123 = vector.broadcast %cst_46 : f32 to vector<16x64xf32>
    %124 = vector.broadcast %cst_47 : f32 to vector<16x64xf32>
    %125 = arith.select %122, %123, %124 : vector<16x64xi1>, vector<16x64xf32>
    %126 = math.absf %120 : vector<16x64xf32>
    %cst_48 = arith.constant 0.327591091 : f32
    %127 = vector.broadcast %cst_48 : f32 to vector<16x64xf32>
    %128 = arith.mulf %127, %126 : vector<16x64xf32>
    %cst_49 = arith.constant 1.000000e+00 : f32
    %129 = vector.broadcast %cst_49 : f32 to vector<16x64xf32>
    %130 = arith.addf %129, %128 : vector<16x64xf32>
    %cst_50 = arith.constant 1.000000e+00 : f32
    %131 = vector.broadcast %cst_50 : f32 to vector<16x64xf32>
    %132 = arith.divf %131, %130 : vector<16x64xf32>
    %cst_51 = arith.constant 1.06140542 : f32
    %133 = vector.broadcast %cst_51 : f32 to vector<16x64xf32>
    %134 = arith.mulf %133, %132 : vector<16x64xf32>
    %cst_52 = arith.constant -1.45315206 : f32
    %135 = vector.broadcast %cst_52 : f32 to vector<16x64xf32>
    %136 = arith.addf %134, %135 : vector<16x64xf32>
    %137 = arith.mulf %136, %132 : vector<16x64xf32>
    %cst_53 = arith.constant 1.42141378 : f32
    %138 = vector.broadcast %cst_53 : f32 to vector<16x64xf32>
    %139 = arith.addf %137, %138 : vector<16x64xf32>
    %140 = arith.mulf %139, %132 : vector<16x64xf32>
    %cst_54 = arith.constant -0.284496725 : f32
    %141 = vector.broadcast %cst_54 : f32 to vector<16x64xf32>
    %142 = arith.addf %140, %141 : vector<16x64xf32>
    %143 = arith.mulf %142, %132 : vector<16x64xf32>
    %cst_55 = arith.constant 0.254829586 : f32
    %144 = vector.broadcast %cst_55 : f32 to vector<16x64xf32>
    %145 = arith.addf %143, %144 : vector<16x64xf32>
    %146 = arith.mulf %145, %132 : vector<16x64xf32>
    %cst_56 = arith.constant 0.000000e+00 : f32
    %147 = vector.broadcast %cst_56 : f32 to vector<16x64xf32>
    %148 = arith.subf %147, %126 : vector<16x64xf32>
    %149 = arith.mulf %148, %126 : vector<16x64xf32>
    %150 = math.exp %149 : vector<16x64xf32>
    %151 = arith.mulf %146, %150 : vector<16x64xf32>
    %cst_57 = arith.constant 1.000000e+00 : f32
    %152 = vector.broadcast %cst_57 : f32 to vector<16x64xf32>
    %153 = arith.subf %152, %151 : vector<16x64xf32>
    %154 = arith.mulf %125, %153 : vector<16x64xf32>
    %cst_58 = arith.constant 1.000000e+00 : f32
    %155 = vector.broadcast %cst_58 : f32 to vector<16x64xf32>
    %156 = arith.addf %155, %154 : vector<16x64xf32>
    %157 = arith.mulf %118, %156 : vector<16x64xf32>
    %158 = vector.extract_strided_slice %20 {offsets = [0, 0, 0], sizes = [1, 32, 64], strides = [1, 1, 1]} : vector<2x32x64xf32> to vector<1x32x64xf32>
    %159 = vector.shape_cast %158 : vector<1x32x64xf32> to vector<32x64xf32>
    %cst_59 = arith.constant dense<0.000000e+00> : vector<16x32xf32>
    %160 = tpu.matmul %157, %159, %cst_59 {dimension_numbers = #tpu.dot_dimension_numbers<[1], [1], [0], [0], [0, 0, 1, 0], [], []>} : vector<16x64xf32>, vector<32x64xf32>, vector<16x32xf32> -> vector<16x32xf32>
    %161 = vector.broadcast %13 : vector<1x32xf32> to vector<16x32xf32>
    %162 = arith.addf %160, %161 : vector<16x32xf32>
    %163 = arith.addf %88, %162 : vector<16x32xf32>
    %164 = arith.addf %163, %3 : vector<16x32xf32>
    %cst_60 = arith.constant dense<0.000000e+00> : vector<16xf32>
    %165 = vector.multi_reduction <add>, %164, %cst_60 [1] : vector<16x32xf32> to vector<16xf32>
    %166 = vector.shape_cast %165 : vector<16xf32> to vector<16x1xf32>
    %cst_61 = arith.constant 3.200000e+01 : f32
    %167 = vector.broadcast %cst_61 : f32 to vector<16x1xf32>
    %168 = arith.divf %166, %167 : vector<16x1xf32>
    %169 = vector.broadcast %168 : vector<16x1xf32> to vector<16x32xf32>
    %170 = arith.subf %164, %169 : vector<16x32xf32>
    %171 = arith.mulf %170, %170 : vector<16x32xf32>
    %cst_62 = arith.constant dense<0.000000e+00> : vector<16xf32>
    %172 = vector.multi_reduction <add>, %171, %cst_62 [1] : vector<16x32xf32> to vector<16xf32>
    %173 = vector.shape_cast %172 : vector<16xf32> to vector<16x1xf32>
    %cst_63 = arith.constant 3.200000e+01 : f32
    %174 = vector.broadcast %cst_63 : f32 to vector<16x1xf32>
    %175 = arith.divf %173, %174 : vector<16x1xf32>
    %176 = vector.broadcast %168 : vector<16x1xf32> to vector<16x32xf32>
    %177 = arith.subf %164, %176 : vector<16x32xf32>
    %cst_64 = arith.constant 9.99999974E-6 : f32
    %178 = vector.broadcast %cst_64 : f32 to vector<16x1xf32>
    %179 = arith.addf %175, %178 : vector<16x1xf32>
    %180 = math.rsqrt %179 : vector<16x1xf32>
    %181 = vector.broadcast %180 : vector<16x1xf32> to vector<16x32xf32>
    %182 = arith.mulf %177, %181 : vector<16x32xf32>
    %183 = vector.broadcast %10 : vector<1x32xf32> to vector<16x32xf32>
    %184 = arith.mulf %182, %183 : vector<16x32xf32>
    %185 = vector.broadcast %11 : vector<1x32xf32> to vector<16x32xf32>
    %186 = arith.addf %184, %185 : vector<16x32xf32>
    %187 = vector.extract_strided_slice %16 {offsets = [1, 0, 0], sizes = [1, 64, 32], strides = [1, 1, 1]} : vector<2x64x32xf32> to vector<1x64x32xf32>
    %188 = vector.shape_cast %187 : vector<1x64x32xf32> to vector<64x32xf32>
    %189 = vector.extract_strided_slice %18 {offsets = [1, 0], sizes = [1, 64], strides = [1, 1]} : vector<2x64xf32> to vector<1x64xf32>
    %cst_65 = arith.constant dense<0.000000e+00> : vector<16x64xf32>
    %190 = tpu.matmul %186, %188, %cst_65 {dimension_numbers = #tpu.dot_dimension_numbers<[1], [1], [0], [0], [0, 0, 1, 0], [], []>} : vector<16x32xf32>, vector<64x32xf32>, vector<16x64xf32> -> vector<16x64xf32>
    %191 = vector.broadcast %189 : vector<1x64xf32> to vector<16x64xf32>
    %192 = arith.addf %190, %191 : vector<16x64xf32>
    %cst_66 = arith.constant 5.000000e-01 : f32
    %193 = vector.broadcast %cst_66 : f32 to vector<16x64xf32>
    %194 = arith.mulf %193, %192 : vector<16x64xf32>
    %cst_67 = arith.constant 0.707106769 : f32
    %195 = vector.broadcast %cst_67 : f32 to vector<16x64xf32>
    %196 = arith.mulf %192, %195 : vector<16x64xf32>
    %cst_68 = arith.constant 0.000000e+00 : f32
    %197 = vector.broadcast %cst_68 : f32 to vector<16x64xf32>
    %198 = arith.cmpf oge, %196, %197 : vector<16x64xf32>
    %cst_69 = arith.constant 1.000000e+00 : f32
    %cst_70 = arith.constant -1.000000e+00 : f32
    %199 = vector.broadcast %cst_69 : f32 to vector<16x64xf32>
    %200 = vector.broadcast %cst_70 : f32 to vector<16x64xf32>
    %201 = arith.select %198, %199, %200 : vector<16x64xi1>, vector<16x64xf32>
    %202 = math.absf %196 : vector<16x64xf32>
    %cst_71 = arith.constant 0.327591091 : f32
    %203 = vector.broadcast %cst_71 : f32 to vector<16x64xf32>
    %204 = arith.mulf %203, %202 : vector<16x64xf32>
    %cst_72 = arith.constant 1.000000e+00 : f32
    %205 = vector.broadcast %cst_72 : f32 to vector<16x64xf32>
    %206 = arith.addf %205, %204 : vector<16x64xf32>
    %cst_73 = arith.constant 1.000000e+00 : f32
    %207 = vector.broadcast %cst_73 : f32 to vector<16x64xf32>
    %208 = arith.divf %207, %206 : vector<16x64xf32>
    %cst_74 = arith.constant 1.06140542 : f32
    %209 = vector.broadcast %cst_74 : f32 to vector<16x64xf32>
    %210 = arith.mulf %209, %208 : vector<16x64xf32>
    %cst_75 = arith.constant -1.45315206 : f32
    %211 = vector.broadcast %cst_75 : f32 to vector<16x64xf32>
    %212 = arith.addf %210, %211 : vector<16x64xf32>
    %213 = arith.mulf %212, %208 : vector<16x64xf32>
    %cst_76 = arith.constant 1.42141378 : f32
    %214 = vector.broadcast %cst_76 : f32 to vector<16x64xf32>
    %215 = arith.addf %213, %214 : vector<16x64xf32>
    %216 = arith.mulf %215, %208 : vector<16x64xf32>
    %cst_77 = arith.constant -0.284496725 : f32
    %217 = vector.broadcast %cst_77 : f32 to vector<16x64xf32>
    %218 = arith.addf %216, %217 : vector<16x64xf32>
    %219 = arith.mulf %218, %208 : vector<16x64xf32>
    %cst_78 = arith.constant 0.254829586 : f32
    %220 = vector.broadcast %cst_78 : f32 to vector<16x64xf32>
    %221 = arith.addf %219, %220 : vector<16x64xf32>
    %222 = arith.mulf %221, %208 : vector<16x64xf32>
    %cst_79 = arith.constant 0.000000e+00 : f32
    %223 = vector.broadcast %cst_79 : f32 to vector<16x64xf32>
    %224 = arith.subf %223, %202 : vector<16x64xf32>
    %225 = arith.mulf %224, %202 : vector<16x64xf32>
    %226 = math.exp %225 : vector<16x64xf32>
    %227 = arith.mulf %222, %226 : vector<16x64xf32>
    %cst_80 = arith.constant 1.000000e+00 : f32
    %228 = vector.broadcast %cst_80 : f32 to vector<16x64xf32>
    %229 = arith.subf %228, %227 : vector<16x64xf32>
    %230 = arith.mulf %201, %229 : vector<16x64xf32>
    %cst_81 = arith.constant 1.000000e+00 : f32
    %231 = vector.broadcast %cst_81 : f32 to vector<16x64xf32>
    %232 = arith.addf %231, %230 : vector<16x64xf32>
    %233 = arith.mulf %194, %232 : vector<16x64xf32>
    %234 = vector.extract_strided_slice %20 {offsets = [1, 0, 0], sizes = [1, 32, 64], strides = [1, 1, 1]} : vector<2x32x64xf32> to vector<1x32x64xf32>
    %235 = vector.shape_cast %234 : vector<1x32x64xf32> to vector<32x64xf32>
    %cst_82 = arith.constant dense<0.000000e+00> : vector<16x32xf32>
    %236 = tpu.matmul %233, %235, %cst_82 {dimension_numbers = #tpu.dot_dimension_numbers<[1], [1], [0], [0], [0, 0, 1, 0], [], []>} : vector<16x64xf32>, vector<32x64xf32>, vector<16x32xf32> -> vector<16x32xf32>
    %237 = vector.broadcast %14 : vector<1x32xf32> to vector<16x32xf32>
    %238 = arith.addf %236, %237 : vector<16x32xf32>
    %239 = arith.addf %164, %238 : vector<16x32xf32>
    %c0_83 = arith.constant 0 : index
    %c0_84 = arith.constant 0 : index
    %240 = vector.load %arg12[%c0_83, %c0_84] : memref<16x32xf32, #tpu.memory_space<vmem>>, vector<16x32xf32>
    tpu.vector_store %arg12[%c0_83, %c0_84], %239 {strides = array<i32>} : memref<16x32xf32, #tpu.memory_space<vmem>>, vector<16x32xf32>,
    %c1_i32 = arith.constant 1 : i32
    %241 = arith.cmpi eq, %arg0, %c1_i32 : i32
    %242 = arith.extui %241 : i1 to i32
    %c0_i32_85 = arith.constant 0 : i32
    %243 = arith.cmpi ne, %242, %c0_i32_85 : i32
    scf.if %243 {
      %c0_86 = arith.constant 0 : index
      %c0_87 = arith.constant 0 : index
      %244 = vector.load %arg10[%c0_86, %c0_87] : memref<2x32xf32, #tpu.memory_space<vmem>>, vector<2x32xf32>
      %245 = vector.extract_strided_slice %244 {offsets = [0, 0], sizes = [1, 32], strides = [1, 1]} : vector<2x32xf32> to vector<1x32xf32>
      %246 = vector.extract_strided_slice %244 {offsets = [1, 0], sizes = [1, 32], strides = [1, 1]} : vector<2x32xf32> to vector<1x32xf32>
      %cst_88 = arith.constant dense<0.000000e+00> : vector<16xf32>
      %247 = vector.multi_reduction <add>, %239, %cst_88 [1] : vector<16x32xf32> to vector<16xf32>
      %248 = vector.shape_cast %247 : vector<16xf32> to vector<16x1xf32>
      %cst_89 = arith.constant 3.200000e+01 : f32
      %249 = vector.broadcast %cst_89 : f32 to vector<16x1xf32>
      %250 = arith.divf %248, %249 : vector<16x1xf32>
      %251 = vector.broadcast %250 : vector<16x1xf32> to vector<16x32xf32>
      %252 = arith.subf %239, %251 : vector<16x32xf32>
      %253 = arith.mulf %252, %252 : vector<16x32xf32>
      %cst_90 = arith.constant dense<0.000000e+00> : vector<16xf32>
      %254 = vector.multi_reduction <add>, %253, %cst_90 [1] : vector<16x32xf32> to vector<16xf32>
      %255 = vector.shape_cast %254 : vector<16xf32> to vector<16x1xf32>
      %cst_91 = arith.constant 3.200000e+01 : f32
      %256 = vector.broadcast %cst_91 : f32 to vector<16x1xf32>
      %257 = arith.divf %255, %256 : vector<16x1xf32>
      %258 = vector.broadcast %250 : vector<16x1xf32> to vector<16x32xf32>
      %259 = arith.subf %239, %258 : vector<16x32xf32>
      %cst_92 = arith.constant 9.99999974E-6 : f32
      %260 = vector.broadcast %cst_92 : f32 to vector<16x1xf32>
      %261 = arith.addf %257, %260 : vector<16x1xf32>
      %262 = math.rsqrt %261 : vector<16x1xf32>
      %263 = vector.broadcast %262 : vector<16x1xf32> to vector<16x32xf32>
      %264 = arith.mulf %259, %263 : vector<16x32xf32>
      %265 = vector.broadcast %245 : vector<1x32xf32> to vector<16x32xf32>
      %266 = arith.mulf %264, %265 : vector<16x32xf32>
      %267 = vector.broadcast %246 : vector<1x32xf32> to vector<16x32xf32>
      %268 = arith.addf %266, %267 : vector<16x32xf32>
      %c0_93 = arith.constant 0 : index
      %c0_94 = arith.constant 0 : index
      %269 = vector.load %arg11[%c0_93, %c0_94] : memref<16x32xf32, #tpu.memory_space<vmem>>, vector<16x32xf32>
      tpu.vector_store %arg11[%c0_93, %c0_94], %268 {strides = array<i32>} : memref<16x32xf32, #tpu.memory_space<vmem>>, vector<16x32xf32>,
    } else {
    }
    return
  }
  func.func @transform_0(%arg0: i32) -> (i32, i32) {
    %c0_i32 = arith.constant 0 : i32
    %c0_i32_0 = arith.constant 0 : i32
    %c0_i32_1 = arith.constant 0 : i32
    return %c0_i32, %c0_i32_0 : i32, i32
  }
  func.func @transform_1(%arg0: i32) -> (i32, i32) {
    %c0_i32 = arith.constant 0 : i32
    %c0_i32_0 = arith.constant 0 : i32
    %c0_i32_1 = arith.constant 0 : i32
    return %c0_i32, %c0_i32_0 : i32, i32
  }
  func.func @transform_2(%arg0: i32) -> (i32, i32, i32) {
    %c0_i32 = arith.constant 0 : i32
    %c0_i32_0 = arith.constant 0 : i32
    %c0_i32_1 = arith.constant 0 : i32
    return %arg0, %c0_i32, %c0_i32_0 : i32, i32, i32
  }
  func.func @transform_3(%arg0: i32) -> (i32, i32, i32) {
    %c0_i32 = arith.constant 0 : i32
    %c0_i32_0 = arith.constant 0 : i32
    %c0_i32_1 = arith.constant 0 : i32
    return %arg0, %c0_i32, %c0_i32_0 : i32, i32, i32
  }
  func.func @transform_4(%arg0: i32) -> (i32, i32, i32) {
    %c0_i32 = arith.constant 0 : i32
    %c0_i32_0 = arith.constant 0 : i32
    %c0_i32_1 = arith.constant 0 : i32
    return %arg0, %c0_i32, %c0_i32_0 : i32, i32, i32
  }
  func.func @transform_5(%arg0: i32) -> (i32, i32, i32, i32) {
    %c0_i32 = arith.constant 0 : i32
    %c0_i32_0 = arith.constant 0 : i32
    %c0_i32_1 = arith.constant 0 : i32
    %c0_i32_2 = arith.constant 0 : i32
    return %arg0, %c0_i32, %c0_i32_0, %c0_i32_1 : i32, i32, i32, i32
  }
  func.func @transform_6(%arg0: i32) -> (i32, i32, i32) {
    %c0_i32 = arith.constant 0 : i32
    %c0_i32_0 = arith.constant 0 : i32
    %c0_i32_1 = arith.constant 0 : i32
    return %arg0, %c0_i32, %c0_i32_0 : i32, i32, i32
  }
  func.func @transform_7(%arg0: i32) -> (i32, i32, i32, i32) {
    %c0_i32 = arith.constant 0 : i32
    %c0_i32_0 = arith.constant 0 : i32
    %c0_i32_1 = arith.constant 0 : i32
    %c0_i32_2 = arith.constant 0 : i32
    return %arg0, %c0_i32, %c0_i32_0, %c0_i32_1 : i32, i32, i32, i32
  }
  func.func @transform_8(%arg0: i32) -> (i32, i32, i32) {
    %c0_i32 = arith.constant 0 : i32
    %c0_i32_0 = arith.constant 0 : i32
    %c0_i32_1 = arith.constant 0 : i32
    return %arg0, %c0_i32, %c0_i32_0 : i32, i32, i32
  }
  func.func @transform_9(%arg0: i32) -> (i32, i32) {
    %c0_i32 = arith.constant 0 : i32
    %c0_i32_0 = arith.constant 0 : i32
    %c0_i32_1 = arith.constant 0 : i32
    return %c0_i32, %c0_i32_0 : i32, i32
  }
  func.func @transform_10(%arg0: i32) -> (i32, i32) {
    %c0_i32 = arith.constant 0 : i32
    %c0_i32_0 = arith.constant 0 : i32
    %c0_i32_1 = arith.constant 0 : i32
    return %c0_i32, %c0_i32_0 : i32, i32
  }
}

</mosaic_0001>

<llo_original>
// kernel: tpu_custom_call.1
$region0: #{tpu_custom_call.1}
  #allocation0 [shape = 'u32[]', space=smem, size = 0x4, offset = 0x4, fixed_abs, tag = 'smem constant byte address 0x4 - core index']
  #allocation1 [shape = 'u32[144,128]{1,0:T(1,128)}', space=vmem, size = 0x12000, scoped, tag = 'internal scratch']
  #allocation2 [shape = 'f32[16,32]{1,0:T(8,128)}', space=vmem, size = 0x2000, scoped, tag = 'scratch operand']
  %s0 = inlined_call_operand.vmem [shape: f32[16,32], index: 0, kind: input, shape index: {}]
  %s1 = inlined_call_operand.vmem [shape: f32[64,64], index: 1, kind: input, shape index: {}]
  %s2 = inlined_call_operand.vmem [shape: f32[2,96,32], index: 2, kind: input, shape index: {}]
  %s3 = inlined_call_operand.vmem [shape: f32[2,1,96], index: 3, kind: input, shape index: {}]
  %s4 = inlined_call_operand.vmem [shape: f32[2,32,32], index: 4, kind: input, shape index: {}]
  %s5 = inlined_call_operand.vmem [shape: f32[2,2,64,32], index: 5, kind: input, shape index: {}]
  %s6 = inlined_call_operand.vmem [shape: f32[2,2,64], index: 6, kind: input, shape index: {}]
  %s7 = inlined_call_operand.vmem [shape: f32[2,2,32,64], index: 7, kind: input, shape index: {}]
  %s8 = inlined_call_operand.vmem [shape: f32[2,9,32], index: 8, kind: input, shape index: {}]
  %s9 = inlined_call_operand.vmem [shape: f32[2,32], index: 9, kind: input, shape index: {}]
  %s10 = inlined_call_operand.hbm [shape: f32[16,32], index: 10, kind: output, shape index: {}]
  %s11 = sld [smem:[#allocation0]]
  $region81: #{tpu_custom_call.1} parent=0
    _
  %s13 = ssub.s32 1, %s11
  %s14 = scalar_select 0, %s13, %s11
  $region1: #{tpu_custom_call.1} parent=0
    #allocation3 [shape = 'u8[8192]{0}', space=vmem, size = 0x2000, scoped, tag = 'output window, operand 0, single buffered']
    #allocation4 [shape = 's32[2]{0}', space=sflag, size = 0x8, scoped, tag = 'scoped memory for tpu_custom_call.1']
    %15 = vsyncpa [#allocation4], 0
    loop: start=0, step=1, limit=4
    $region2: #{tpu_custom_call.1} parent=1 // loop_pre_header
      _
    $region3: #{tpu_custom_call.1} parent=1 // loop_header
      %s17 = sphi 0, %s21
      %p18 = scmp.ge.s32.totalorder %s17, 4
      %s25 = sphi 0, %s25
      %s27 = sphi 0, %s25
      %s28 = sphi 0, %s27
      %s42 = sphi 0, %s28
      %s46 = sphi 0, %s46
      %s48 = sphi 0, %s46
      %s49 = sphi 0, %s48
      %s63 = sphi 0, %s49
      %s69 = sphi 0, %s71
      %s72 = sphi 0, %s69
      %s73 = sphi 0, %s72
      %s89 = sphi 0, %s73
      %s95 = sphi 0, %s97
      %s98 = sphi 0, %s95
      %s99 = sphi 0, %s98
      %s115 = sphi 0, %s99
      %s121 = sphi 0, %s123
      %s124 = sphi 0, %s121
      %s125 = sphi 0, %s124
      %s141 = sphi 0, %s125
      %s147 = sphi 0, %s149
      %s150 = sphi 0, %s147
      %s151 = sphi 0, %s150
      %s167 = sphi 0, %s151
      %s173 = sphi 0, %s175
      %s176 = sphi 0, %s173
      %s177 = sphi 0, %s176
      %s193 = sphi 0, %s177
      %s199 = sphi 0, %s201
      %s202 = sphi 0, %s199
      %s203 = sphi 0, %s202
      %s219 = sphi 0, %s203
      %s225 = sphi 0, %s227
      %s228 = sphi 0, %s225
      %s229 = sphi 0, %s228
      %s245 = sphi 0, %s229
      %s249 = sphi 0, %s249
      %s251 = sphi 0, %s249
      %s252 = sphi 0, %s251
      %s266 = sphi 0, %s252
      %s270 = sphi 0, %s270
      %s272 = sphi 0, %s270
      %s273 = sphi 0, %s272
      %s287 = sphi 0, %s273
    $region4: #{tpu_custom_call.1} parent=1 // loop_header_branch
      %20 = sbr.rel (%p18) target = $region8
    $region5: #{tpu_custom_call.1} parent=1 // loop_body
      %s22 = ssub.s32 %s17, 1
      %s23 = ssub.s32 %s17, 2
      %s24 = sadd.s32 %s17, 1
      %s26 = sadd.s32 %s25, 1
      %p29 = scmp.eq.s32.totalorder %s17, 1
      %p30 = scmp.ne.s32.totalorder %s25, %s27
      %p31 = scmp.eq.s32.totalorder %s17, 0
      %p32 = por %p30, %p31
      %p33 = scmp.ne.s32.totalorder %s25, %s27
      %p34 = scmp.eq.s32.totalorder %s22, 1
      %p35 = por %p33, %p34
      %p36 = scmp.ne.s32.totalorder %s27, %s28
      %p37 = scmp.eq.s32.totalorder %s22, 0
      %p38 = por %p36, %p37
      %p39 = scmp.ne.s32.totalorder %s27, %s28
      %p40 = scmp.eq.s32.totalorder %s23, 1
      %p41 = por %p39, %p40
      %p43 = scmp.ne.s32.totalorder %s28, %s42
      %p44 = scmp.eq.s32.totalorder %s23, 0
      %p45 = por %p43, %p44
      %s47 = sadd.s32 %s46, 1
      %p50 = scmp.eq.s32.totalorder %s17, 1
      %p51 = scmp.ne.s32.totalorder %s46, %s48
      %p52 = scmp.eq.s32.totalorder %s17, 0
      %p53 = por %p51, %p52
      %p54 = scmp.ne.s32.totalorder %s46, %s48
      %p55 = scmp.eq.s32.totalorder %s22, 1
      %p56 = por %p54, %p55
      %p57 = scmp.ne.s32.totalorder %s48, %s49
      %p58 = scmp.eq.s32.totalorder %s22, 0
      %p59 = por %p57, %p58
      %p60 = scmp.ne.s32.totalorder %s48, %s49
      %p61 = scmp.eq.s32.totalorder %s23, 1
      %p62 = por %p60, %p61
      %p64 = scmp.ne.s32.totalorder %s49, %s63
      %p65 = scmp.eq.s32.totalorder %s23, 0
      %p66 = por %p64, %p65
      %s67 = ssub.s32 %s17, %s24
      %p68 = scmp.eq.s32.totalorder %s67, 0
      %s70 = sadd.s32 %s69, 1
      %s71 = scalar_select %p68, %s69, %s70
      %p74 = pneg %p68
      %p75 = scmp.eq.s32.totalorder %s17, 1
      %p76 = por %p74, %p75
      %p77 = scmp.ne.s32.totalorder %s69, %s72
      %p78 = scmp.eq.s32.totalorder %s17, 0
      %p79 = por %p77, %p78
      %p80 = scmp.ne.s32.totalorder %s69, %s72
      %p81 = scmp.eq.s32.totalorder %s22, 1
      %p82 = por %p80, %p81
      %p83 = scmp.ne.s32.totalorder %s72, %s73
      %p84 = scmp.eq.s32.totalorder %s22, 0
      %p85 = por %p83, %p84
      %p86 = scmp.ne.s32.totalorder %s72, %s73
      %p87 = scmp.eq.s32.totalorder %s23, 1
      %p88 = por %p86, %p87
      %p90 = scmp.ne.s32.totalorder %s73, %s89
      %p91 = scmp.eq.s32.totalorder %s23, 0
      %p92 = por %p90, %p91
      %s93 = ssub.s32 %s17, %s24
      %p94 = scmp.eq.s32.totalorder %s93, 0
      %s96 = sadd.s32 %s95, 1
      %s97 = scalar_select %p94, %s95, %s96
      %p100 = pneg %p94
      %p101 = scmp.eq.s32.totalorder %s17, 1
      %p102 = por %p100, %p101
      %p103 = scmp.ne.s32.totalorder %s95, %s98
      %p104 = scmp.eq.s32.totalorder %s17, 0
      %p105 = por %p103, %p104
      %p106 = scmp.ne.s32.totalorder %s95, %s98
      %p107 = scmp.eq.s32.totalorder %s22, 1
      %p108 = por %p106, %p107
      %p109 = scmp.ne.s32.totalorder %s98, %s99
      %p110 = scmp.eq.s32.totalorder %s22, 0
      %p111 = por %p109, %p110
      %p112 = scmp.ne.s32.totalorder %s98, %s99
      %p113 = scmp.eq.s32.totalorder %s23, 1
      %p114 = por %p112, %p113
      %p116 = scmp.ne.s32.totalorder %s99, %s115
      %p117 = scmp.eq.s32.totalorder %s23, 0
      %p118 = por %p116, %p117
      %s119 = ssub.s32 %s17, %s24
      %p120 = scmp.eq.s32.totalorder %s119, 0
      %s122 = sadd.s32 %s121, 1
      %s123 = scalar_select %p120, %s121, %s122
      %p126 = pneg %p120
      %p127 = scmp.eq.s32.totalorder %s17, 1
      %p128 = por %p126, %p127
      %p129 = scmp.ne.s32.totalorder %s121, %s124
      %p130 = scmp.eq.s32.totalorder %s17, 0
      %p131 = por %p129, %p130
      %p132 = scmp.ne.s32.totalorder %s121, %s124
      %p133 = scmp.eq.s32.totalorder %s22, 1
      %p134 = por %p132, %p133
      %p135 = scmp.ne.s32.totalorder %s124, %s125
      %p136 = scmp.eq.s32.totalorder %s22, 0
      %p137 = por %p135, %p136
      %p138 = scmp.ne.s32.totalorder %s124, %s125
      %p139 = scmp.eq.s32.totalorder %s23, 1
      %p140 = por %p138, %p139
      %p142 = scmp.ne.s32.totalorder %s125, %s141
      %p143 = scmp.eq.s32.totalorder %s23, 0
      %p144 = por %p142, %p143
      %s145 = ssub.s32 %s17, %s24
      %p146 = scmp.eq.s32.totalorder %s145, 0
      %s148 = sadd.s32 %s147, 1
      %s149 = scalar_select %p146, %s147, %s148
      %p152 = pneg %p146
      %p153 = scmp.eq.s32.totalorder %s17, 1
      %p154 = por %p152, %p153
      %p155 = scmp.ne.s32.totalorder %s147, %s150
      %p156 = scmp.eq.s32.totalorder %s17, 0
      %p157 = por %p155, %p156
      %p158 = scmp.ne.s32.totalorder %s147, %s150
      %p159 = scmp.eq.s32.totalorder %s22, 1
      %p160 = por %p158, %p159
      %p161 = scmp.ne.s32.totalorder %s150, %s151
      %p162 = scmp.eq.s32.totalorder %s22, 0
      %p163 = por %p161, %p162
      %p164 = scmp.ne.s32.totalorder %s150, %s151
      %p165 = scmp.eq.s32.totalorder %s23, 1
      %p166 = por %p164, %p165
      %p168 = scmp.ne.s32.totalorder %s151, %s167
      %p169 = scmp.eq.s32.totalorder %s23, 0
      %p170 = por %p168, %p169
      %s171 = ssub.s32 %s17, %s24
      %p172 = scmp.eq.s32.totalorder %s171, 0
      %s174 = sadd.s32 %s173, 1
      %s175 = scalar_select %p172, %s173, %s174
      %p178 = pneg %p172
      %p179 = scmp.eq.s32.totalorder %s17, 1
      %p180 = por %p178, %p179
      %p181 = scmp.ne.s32.totalorder %s173, %s176
      %p182 = scmp.eq.s32.totalorder %s17, 0
      %p183 = por %p181, %p182
      %p184 = scmp.ne.s32.totalorder %s173, %s176
      %p185 = scmp.eq.s32.totalorder %s22, 1
      %p186 = por %p184, %p185
      %p187 = scmp.ne.s32.totalorder %s176, %s177
      %p188 = scmp.eq.s32.totalorder %s22, 0
      %p189 = por %p187, %p188
      %p190 = scmp.ne.s32.totalorder %s176, %s177
      %p191 = scmp.eq.s32.totalorder %s23, 1
      %p192 = por %p190, %p191
      %p194 = scmp.ne.s32.totalorder %s177, %s193
      %p195 = scmp.eq.s32.totalorder %s23, 0
      %p196 = por %p194, %p195
      %s197 = ssub.s32 %s17, %s24
      %p198 = scmp.eq.s32.totalorder %s197, 0
      %s200 = sadd.s32 %s199, 1
      %s201 = scalar_select %p198, %s199, %s200
      %p204 = pneg %p198
      %p205 = scmp.eq.s32.totalorder %s17, 1
      %p206 = por %p204, %p205
      %p207 = scmp.ne.s32.totalorder %s199, %s202
      %p208 = scmp.eq.s32.totalorder %s17, 0
      %p209 = por %p207, %p208
      %p210 = scmp.ne.s32.totalorder %s199, %s202
      %p211 = scmp.eq.s32.totalorder %s22, 1
      %p212 = por %p210, %p211
      %p213 = scmp.ne.s32.totalorder %s202, %s203
      %p214 = scmp.eq.s32.totalorder %s22, 0
      %p215 = por %p213, %p214
      %p216 = scmp.ne.s32.totalorder %s202, %s203
      %p217 = scmp.eq.s32.totalorder %s23, 1
      %p218 = por %p216, %p217
      %p220 = scmp.ne.s32.totalorder %s203, %s219
      %p221 = scmp.eq.s32.totalorder %s23, 0
      %p222 = por %p220, %p221
      %s223 = ssub.s32 %s17, %s24
      %p224 = scmp.eq.s32.totalorder %s223, 0
      %s226 = sadd.s32 %s225, 1
      %s227 = scalar_select %p224, %s225, %s226
      %p230 = pneg %p224
      %p231 = scmp.eq.s32.totalorder %s17, 1
      %p232 = por %p230, %p231
      %p233 = scmp.ne.s32.totalorder %s225, %s228
      %p234 = scmp.eq.s32.totalorder %s17, 0
      %p235 = por %p233, %p234
      %p236 = scmp.ne.s32.totalorder %s225, %s228
      %p237 = scmp.eq.s32.totalorder %s22, 1
      %p238 = por %p236, %p237
      %p239 = scmp.ne.s32.totalorder %s228, %s229
      %p240 = scmp.eq.s32.totalorder %s22, 0
      %p241 = por %p239, %p240
      %p242 = scmp.ne.s32.totalorder %s228, %s229
      %p243 = scmp.eq.s32.totalorder %s23, 1
      %p244 = por %p242, %p243
      %p246 = scmp.ne.s32.totalorder %s229, %s245
      %p247 = scmp.eq.s32.totalorder %s23, 0
      %p248 = por %p246, %p247
      %s250 = sadd.s32 %s249, 1
      %p253 = scmp.eq.s32.totalorder %s17, 1
      %p254 = scmp.ne.s32.totalorder %s249, %s251
      %p255 = scmp.eq.s32.totalorder %s17, 0
      %p256 = por %p254, %p255
      %p257 = scmp.ne.s32.totalorder %s249, %s251
      %p258 = scmp.eq.s32.totalorder %s22, 1
      %p259 = por %p257, %p258
      %p260 = scmp.ne.s32.totalorder %s251, %s252
      %p261 = scmp.eq.s32.totalorder %s22, 0
      %p262 = por %p260, %p261
      %p263 = scmp.ne.s32.totalorder %s251, %s252
      %p264 = scmp.eq.s32.totalorder %s23, 1
      %p265 = por %p263, %p264
      %p267 = scmp.ne.s32.totalorder %s252, %s266
      %p268 = scmp.eq.s32.totalorder %s23, 0
      %p269 = por %p267, %p268
      %s271 = sadd.s32 %s270, 1
      %p274 = scmp.eq.s32.totalorder %s17, 1
      %p275 = scmp.ne.s32.totalorder %s270, %s272
      %p276 = scmp.eq.s32.totalorder %s17, 0
      %p277 = por %p275, %p276
      %p278 = scmp.ne.s32.totalorder %s270, %s272
      %p279 = scmp.eq.s32.totalorder %s22, 1
      %p280 = por %p278, %p279
      %p281 = scmp.ne.s32.totalorder %s272, %s273
      %p282 = scmp.eq.s32.totalorder %s22, 0
      %p283 = por %p281, %p282
      %p284 = scmp.ne.s32.totalorder %s272, %s273
      %p285 = scmp.eq.s32.totalorder %s23, 1
      %p286 = por %p284, %p285
      %p288 = scmp.ne.s32.totalorder %s273, %s287
      %p289 = scmp.eq.s32.totalorder %s23, 0
      %p290 = por %p288, %p289
      %p291 = scmp.le.s32.totalorder 1, %s17
      %p292 = scmp.lt.s32.totalorder %s17, 3
      %p293 = pnand %p291, %p292
      %p294 = pneg %p293
      // Predicated region
      $region9: #{tpu_custom_call.1} parent=5 // pred_check
        _
      $region10: #{tpu_custom_call.1} parent=5 // pred_check_branch
        %296 = sbr.rel (%p293) target = $region12
      $region11: #{tpu_custom_call.1} parent=5 // pred_region
        %s297 = ssub.s32 %s17, 1
        // Predicated region
        $region13: #{tpu_custom_call.1} parent=11 // pred_check
          %p298 = pneg %p38
        $region14: #{tpu_custom_call.1} parent=11 // pred_check_branch
          %300 = sbr.rel (%p298) target = $region16
        $region15: #{tpu_custom_call.1} parent=11 // pred_region
          _
        $region16: #{tpu_custom_call.1} parent=11 // pred_fallthru
          _
        // Predicated region
        $region17: #{tpu_custom_call.1} parent=11 // pred_check
          %p301 = pneg %p59
        $region18: #{tpu_custom_call.1} parent=11 // pred_check_branch
          %303 = sbr.rel (%p301) target = $region20
        $region19: #{tpu_custom_call.1} parent=11 // pred_region
          _
        $region20: #{tpu_custom_call.1} parent=11 // pred_fallthru
          _
        // Predicated region
        $region21: #{tpu_custom_call.1} parent=11 // pred_check
          %p304 = pneg %p262
        $region22: #{tpu_custom_call.1} parent=11 // pred_check_branch
          %306 = sbr.rel (%p304) target = $region24
        $region23: #{tpu_custom_call.1} parent=11 // pred_region
          _
        $region24: #{tpu_custom_call.1} parent=11 // pred_fallthru
          _
      $region12: #{tpu_custom_call.1} parent=5 // pred_fallthru
        _
      %p307 = scmp.lt.s32.totalorder %s17, 2
      // Predicated region
      $region25: #{tpu_custom_call.1} parent=5 // pred_check
        %p308 = pneg %p307
      $region26: #{tpu_custom_call.1} parent=5 // pred_check_branch
        %310 = sbr.rel (%p308) target = $region28
      $region27: #{tpu_custom_call.1} parent=5 // pred_region
        // Predicated region
        $region29: #{tpu_custom_call.1} parent=27 // pred_check
          %p311 = pneg %p79
        $region30: #{tpu_custom_call.1} parent=27 // pred_check_branch
          %313 = sbr.rel (%p311) target = $region32
        $region31: #{tpu_custom_call.1} parent=27 // pred_region
          %p314 = scmp.lt.s32.totalorder %s17, 1
          %s315 = scalar_select %p314, %s17, 1
          %s316 = smul.addr %s315, 12
          %s317 = smul.addr %s316, 8
          %s318 = scalar_lea.vmem %s2, %s317
        $region32: #{tpu_custom_call.1} parent=27 // pred_fallthru
          _
        // Predicated region
        $region33: #{tpu_custom_call.1} parent=27 // pred_check
          %p319 = pneg %p105
        $region34: #{tpu_custom_call.1} parent=27 // pred_check_branch
          %321 = sbr.rel (%p319) target = $region36
        $region35: #{tpu_custom_call.1} parent=27 // pred_region
          %p322 = scmp.lt.s32.totalorder %s17, 1
          %s323 = scalar_select %p322, %s17, 1
          %s324 = scalar_lea.vmem %s3, %s323
        $region36: #{tpu_custom_call.1} parent=27 // pred_fallthru
          _
        // Predicated region
        $region37: #{tpu_custom_call.1} parent=27 // pred_check
          %p325 = pneg %p131
        $region38: #{tpu_custom_call.1} parent=27 // pred_check_branch
          %327 = sbr.rel (%p325) target = $region40
        $region39: #{tpu_custom_call.1} parent=27 // pred_region
          %p328 = scmp.lt.s32.totalorder %s17, 1
          %s329 = scalar_select %p328, %s17, 1
          %s330 = smul.addr %s329, 4
          %s331 = smul.addr %s330, 8
          %s332 = scalar_lea.vmem %s4, %s331
        $region40: #{tpu_custom_call.1} parent=27 // pred_fallthru
          _
        // Predicated region
        $region41: #{tpu_custom_call.1} parent=27 // pred_check
          %p333 = pneg %p157
        $region42: #{tpu_custom_call.1} parent=27 // pred_check_branch
          %335 = sbr.rel (%p333) target = $region44
        $region43: #{tpu_custom_call.1} parent=27 // pred_region
          %p336 = scmp.lt.s32.totalorder %s17, 1
          %s337 = scalar_select %p336, %s17, 1
          %s338 = smul.addr %s337, 16
          %s339 = smul.addr %s338, 8
          %s340 = scalar_lea.vmem %s5, %s339
        $region44: #{tpu_custom_call.1} parent=27 // pred_fallthru
          _
        // Predicated region
        $region45: #{tpu_custom_call.1} parent=27 // pred_check
          %p341 = pneg %p183
        $region46: #{tpu_custom_call.1} parent=27 // pred_check_branch
          %343 = sbr.rel (%p341) target = $region48
        $region47: #{tpu_custom_call.1} parent=27 // pred_region
          %p344 = scmp.lt.s32.totalorder %s17, 1
          %s345 = scalar_select %p344, %s17, 1
          %s346 = smul.addr %s345, 2
          %s347 = scalar_lea.vmem %s6, %s346
        $region48: #{tpu_custom_call.1} parent=27 // pred_fallthru
          _
        // Predicated region
        $region49: #{tpu_custom_call.1} parent=27 // pred_check
          %p348 = pneg %p209
        $region50: #{tpu_custom_call.1} parent=27 // pred_check_branch
          %350 = sbr.rel (%p348) target = $region52
        $region51: #{tpu_custom_call.1} parent=27 // pred_region
          %p351 = scmp.lt.s32.totalorder %s17, 1
          %s352 = scalar_select %p351, %s17, 1
          %s353 = smul.addr %s352, 8
          %s354 = smul.addr %s353, 8
          %s355 = scalar_lea.vmem %s7, %s354
        $region52: #{tpu_custom_call.1} parent=27 // pred_fallthru
          _
        // Predicated region
        $region53: #{tpu_custom_call.1} parent=27 // pred_check
          %p356 = pneg %p235
        $region54: #{tpu_custom_call.1} parent=27 // pred_check_branch
          %358 = sbr.rel (%p356) target = $region56
        $region55: #{tpu_custom_call.1} parent=27 // pred_region
          %p359 = scmp.lt.s32.totalorder %s17, 1
          %s360 = scalar_select %p359, %s17, 1
          %s361 = smul.addr %s360, 2
          %s362 = smul.addr %s361, 8
          %s363 = scalar_lea.vmem %s8, %s362
        $region56: #{tpu_custom_call.1} parent=27 // pred_fallthru
          _
      $region28: #{tpu_custom_call.1} parent=5 // pred_fallthru
        _
      %p364 = scmp.le.s32.totalorder 1, %s17
      %p365 = scmp.lt.s32.totalorder %s17, 3
      %p366 = pnand %p364, %p365
      %p367 = pneg %p366
      // Predicated region
      $region57: #{tpu_custom_call.1} parent=5 // pred_check
        _
      $region58: #{tpu_custom_call.1} parent=5 // pred_check_branch
        %369 = sbr.rel (%p366) target = $region60
      $region59: #{tpu_custom_call.1} parent=5 // pred_region
        %s370 = ssub.s32 %s17, 1
        %p371 = pneg %p38
        %p372 = pneg %p35
        %p373 = pneg %p59
        %p374 = pneg %p56
        %p375 = scmp.lt.s32.totalorder %s22, 1
        %s376 = scalar_select %p375, %s22, 1
        %s377 = smul.addr %s376, 12
        %s378 = smul.addr %s377, 8
        %s379 = scalar_lea.vmem %s2, %s378
        %p380 = pneg %p85
        %p381 = pneg %p82
        %p382 = scmp.lt.s32.totalorder %s22, 1
        %s383 = scalar_select %p382, %s22, 1
        %s384 = scalar_lea.vmem %s3, %s383
        %p385 = pneg %p111
        %p386 = pneg %p108
        %p387 = scmp.lt.s32.totalorder %s22, 1
        %s388 = scalar_select %p387, %s22, 1
        %s389 = smul.addr %s388, 4
        %s390 = smul.addr %s389, 8
        %s391 = scalar_lea.vmem %s4, %s390
        %p392 = pneg %p137
        %p393 = pneg %p134
        %p394 = scmp.lt.s32.totalorder %s22, 1
        %s395 = scalar_select %p394, %s22, 1
        %s396 = smul.addr %s395, 16
        %s397 = smul.addr %s396, 8
        %s398 = scalar_lea.vmem %s5, %s397
        %p399 = pneg %p163
        %p400 = pneg %p160
        %p401 = scmp.lt.s32.totalorder %s22, 1
        %s402 = scalar_select %p401, %s22, 1
        %s403 = smul.addr %s402, 2
        %s404 = scalar_lea.vmem %s6, %s403
        %p405 = pneg %p189
        %p406 = pneg %p186
        %p407 = scmp.lt.s32.totalorder %s22, 1
        %s408 = scalar_select %p407, %s22, 1
        %s409 = smul.addr %s408, 8
        %s410 = smul.addr %s409, 8
        %s411 = scalar_lea.vmem %s7, %s410
        %p412 = pneg %p215
        %p413 = pneg %p212
        %p414 = scmp.lt.s32.totalorder %s22, 1
        %s415 = scalar_select %p414, %s22, 1
        %s416 = smul.addr %s415, 2
        %s417 = smul.addr %s416, 8
        %s418 = scalar_lea.vmem %s8, %s417
        %p419 = pneg %p241
        %p420 = pneg %p238
        %p421 = pneg %p262
        %p422 = pneg %p259
        %p423 = pneg %p283
        %p424 = pneg %p280
        %p425 = scmp.lt.s32.totalorder %s22, 1
        %s426 = scalar_select %p425, %s22, 1
        %s427 = smul.addr %s426, 12
        %s428 = smul.addr %s427, 8
        %s429 = scalar_lea.vmem %s2, %s428
        %p430 = scmp.lt.s32.totalorder %s22, 1
        %s431 = scalar_select %p430, %s22, 1
        %s432 = scalar_lea.vmem %s3, %s431
        %p433 = scmp.lt.s32.totalorder %s22, 1
        %s434 = scalar_select %p433, %s22, 1
        %s435 = smul.addr %s434, 4
        %s436 = smul.addr %s435, 8
        %s437 = scalar_lea.vmem %s4, %s436
        %p438 = scmp.lt.s32.totalorder %s22, 1
        %s439 = scalar_select %p438, %s22, 1
        %s440 = smul.addr %s439, 16
        %s441 = smul.addr %s440, 8
        %s442 = scalar_lea.vmem %s5, %s441
        %p443 = scmp.lt.s32.totalorder %s22, 1
        %s444 = scalar_select %p443, %s22, 1
        %s445 = smul.addr %s444, 2
        %s446 = scalar_lea.vmem %s6, %s445
        %p447 = scmp.lt.s32.totalorder %s22, 1
        %s448 = scalar_select %p447, %s22, 1
        %s449 = smul.addr %s448, 8
        %s450 = smul.addr %s449, 8
        %s451 = scalar_lea.vmem %s7, %s450
        %p452 = scmp.lt.s32.totalorder %s22, 1
        %s453 = scalar_select %p452, %s22, 1
        %s454 = smul.addr %s453, 2
        %s455 = smul.addr %s454, 8
        %s456 = scalar_lea.vmem %s8, %s455
        %p457 = scmp.eq.s32.totalorder %s22, 0
        // Predicated region
        $region61: #{tpu_custom_call.1} parent=59 // pred_check
          %p458 = pneg %p457
        $region62: #{tpu_custom_call.1} parent=59 // pred_check_branch
          %460 = sbr.rel (%p458) target = $region64
        $region63: #{tpu_custom_call.1} parent=59 // pred_region
          %v461 = vld [vmem:[%s0] sm:$0xff]
          %v462 = vld [vmem:[%s0 + $0x8] sm:$0xff]
          %vm463 = vcmask 261120
          %464 = vst.msk [vmem:[#allocation2] sm:$0xff] %vm463, %v461
          %465 = vst.msk [vmem:[#allocation2 + $0x8] sm:$0xff] %vm463, %v462
        $region64: #{tpu_custom_call.1} parent=59 // pred_fallthru
          _
        %v466 = vld [vmem:[#allocation2] sm:$0xff]
        %v467 = vld [vmem:[#allocation2 + $0x8] sm:$0xff]
        %v468 = vld [vmem:[%s456] sm:$0xff]
        %v469 = vld [vmem:[%s456 + $0x8] sm:$0x1]
        %v470 = vld [vmem:[%s442] sm:$0xff]
        %v471 = vld [vmem:[%s442 + $0x8] sm:$0xff]
        %v472 = vld [vmem:[%s442 + $0x10] sm:$0xff]
        %v473 = vld [vmem:[%s442 + $0x18] sm:$0xff]
        %v474 = vld [vmem:[%s442 + $0x20] sm:$0xff]
        %v475 = vld [vmem:[%s442 + $0x28] sm:$0xff]
        %v476 = vld [vmem:[%s442 + $0x30] sm:$0xff]
        %v477 = vld [vmem:[%s442 + $0x38] sm:$0xff]
        %v478 = vld [vmem:[%s442 + $0x40] sm:$0xff]
        %v479 = vld [vmem:[%s442 + $0x48] sm:$0xff]
        %v480 = vld [vmem:[%s442 + $0x50] sm:$0xff]
        %v481 = vld [vmem:[%s442 + $0x58] sm:$0xff]
        %v482 = vld [vmem:[%s442 + $0x60] sm:$0xff]
        %v483 = vld [vmem:[%s442 + $0x68] sm:$0xff]
        %v484 = vld [vmem:[%s442 + $0x70] sm:$0xff]
        %v485 = vld [vmem:[%s442 + $0x78] sm:$0xff]
        %v486 = vld [vmem:[%s446] sm:$0x3]
        %v487 = vld [vmem:[%s451] sm:$0xff]
        %v488 = vld [vmem:[%s451 + $0x8] sm:$0xff]
        %v489 = vld [vmem:[%s451 + $0x10] sm:$0xff]
        %v490 = vld [vmem:[%s451 + $0x18] sm:$0xff]
        %v491 = vld [vmem:[%s451 + $0x20] sm:$0xff]
        %v492 = vld [vmem:[%s451 + $0x28] sm:$0xff]
        %v493 = vld [vmem:[%s451 + $0x30] sm:$0xff]
        %v494 = vld [vmem:[%s451 + $0x38] sm:$0xff]
        %vm495 = vcmask 261120
        %v496 = vsel %vm495, %v466, 0.0
        %497 = vadd.xlane.f32.xlu0 %v496
        %v498 = vpop.xlane.xlu0 %497
        %v499 = vsel %vm495, %v467, 0.0
        %500 = vadd.xlane.f32.xlu0 %v499
        %v501 = vpop.xlane.xlu0 %500
        %v502 = vrcp.pop 32.0
        %v503 = vmul.f32 %v498, %v502
        %v504 = vmul.f32 %v501, %v502
        %v505 = vsub.f32 %v466, %v503
        %v506 = vsub.f32 %v467, %v504
        %v507 = vmul.f32 %v505, %v505
        %v508 = vmul.f32 %v506, %v506
        %v509 = vsel %vm495, %v507, 0.0
        %510 = vadd.xlane.f32.xlu0 %v509
        %v511 = vpop.xlane.xlu0 %510
        %v512 = vsel %vm495, %v508, 0.0
        %513 = vadd.xlane.f32.xlu0 %v512
        %v514 = vpop.xlane.xlu0 %513
        %v515 = vmul.f32 %v511, %v502
        %v516 = vmul.f32 %v514, %v502
        %v517 = vadd.f32 %v515, 1e-05
        %v518 = vadd.f32 %v516, 1e-05
        %v519 = vrsqrt.pop %v517
        %v520 = vrsqrt.pop %v518
        %v521 = vmul.f32 %v505, %v519
        %v522 = vmul.f32 %v506, %v520
        %v523 = vlaneseq
        %v524 = vshrl.u32 %v523, 7
        %v525 = vsub.s32 0, %v524
        %v526 = vrot.slane %v468, %v525
        %v527 = vmul.f32 %v521, %v526
        %v528 = vmul.f32 %v522, %v526
        %v529 = vlaneseq
        %v530 = vshrl.u32 %v529, 7
        %v531 = vsub.s32 1, %v530
        %v532 = vrot.slane %v468, %v531
        %v533 = vadd.f32 %v527, %v532
        %v534 = vadd.f32 %v528, %v532
        %v535 = vld [vmem:[%s429] sm:$0xff]
        %v536 = vld [vmem:[%s429 + $0x8] sm:$0xff]
        %v537 = vld [vmem:[%s429 + $0x10] sm:$0xff]
        %v538 = vld [vmem:[%s429 + $0x18] sm:$0xff]
        %v539 = vld [vmem:[%s429 + $0x20] sm:$0xff]
        %v540 = vld [vmem:[%s429 + $0x28] sm:$0xff]
        %v541 = vld [vmem:[%s429 + $0x30] sm:$0xff]
        %v542 = vld [vmem:[%s429 + $0x38] sm:$0xff]
        %v543 = vld [vmem:[%s429 + $0x40] sm:$0xff]
        %v544 = vld [vmem:[%s429 + $0x48] sm:$0xff]
        %v545 = vld [vmem:[%s429 + $0x50] sm:$0xff]
        %v546 = vld [vmem:[%s429 + $0x58] sm:$0xff]
        %v547 = vld [vmem:[%s432] sm:$0x1]
        %v549 = vlaneseq
        %v550 = vshrl.u32 %v549, 7
        %v551 = vsub.s32 0, %v550
        %v552 = vrot.slane %v547, %v551
        %v555 = vsel %vm495, %v533, 0
        %v558 = vsel %vm495, %v534, 0
        %v561 = vsel %vm495, %v535, 0
        %v564 = vsel %vm495, %v536, 0
        %v567 = vsel %vm495, %v537, 0
        %v570 = vsel %vm495, %v538, 0
        %v573 = vsel %vm495, %v539, 0
        %v576 = vsel %vm495, %v540, 0
        %v579 = vsel %vm495, %v541, 0
        %v582 = vsel %vm495, %v542, 0
        %v585 = vsel %vm495, %v543, 0
        %v588 = vsel %vm495, %v544, 0
        %v591 = vsel %vm495, %v545, 0
        %v594 = vsel %vm495, %v546, 0
        %596 = vmatprep.subr.mxu0 0.0
        %597 = vmatpush1.xpose.msra.mxu0 0.0
        %598 = vmatprep.subr.mxu0 0.0
        %599 = vmatpush1.xpose.msra.mxu0 0.0
        %600 = vmatprep.subr.mxu0 0.0
        %601 = vmatpush1.xpose.msra.mxu0 0.0
        %602 = vmatprep.subr.mxu0 0.0
        %603 = vmatpush1.xpose.msra.mxu0 0.0
        %604 = vmatprep.subr.mxu0 0.0
        %605 = vmatpush1.xpose.msra.mxu0 %v594
        %606 = vmatprep.subr.mxu0 0.0
        %607 = vmatpush1.xpose.msra.mxu0 %v591
        %608 = vmatprep.subr.mxu0 0.0
        %609 = vmatpush1.xpose.msra.mxu0 %v588
        %610 = vmatprep.subr.mxu0 0.0
        %611 = vmatpush1.xpose.msra.mxu0 %v585
        %612 = vmatprep.subr.mxu0 0.0
        %613 = vmatpush1.xpose.msra.mxu0 %v582
        %614 = vmatprep.subr.mxu0 0.0
        %615 = vmatpush1.xpose.msra.mxu0 %v579
        %616 = vmatprep.subr.mxu0 0.0
        %617 = vmatpush1.xpose.msra.mxu0 %v576
        %618 = vmatprep.subr.mxu0 0.0
        %619 = vmatpush1.xpose.msra.mxu0 %v573
        %620 = vmatprep.subr.mxu0 0.0
        %621 = vmatpush1.xpose.msra.mxu0 %v570
        %622 = vmatprep.subr.mxu0 0.0
        %623 = vmatpush1.xpose.msra.mxu0 %v567
        %624 = vmatprep.subr.mxu0 0.0
        %625 = vmatpush1.xpose.msra.mxu0 %v564
        %626 = vmatprep.subr.mxu0 0.0
        %627 = vmatpush1.xpose.msra.mxu0 %v561
        %628 = vmatprep.subr.mxu0 0.0
        %629 = vmatpush2.xpose.msra.mxu0 0.0
        %630 = vmatprep.subr.mxu0 0.0
        %631 = vmatpush2.xpose.msra.mxu0 0.0
        %632 = vmatprep.subr.mxu0 0.0
        %633 = vmatpush2.xpose.msra.mxu0 0.0
        %634 = vmatprep.subr.mxu0 0.0
        %635 = vmatpush2.xpose.msra.mxu0 0.0
        %636 = vmatprep.subr.mxu0 0.0
        %637 = vmatpush2.xpose.msra.mxu0 0.0
        %638 = vmatprep.subr.mxu0 0.0
        %639 = vmatpush2.xpose.msra.mxu0 0.0
        %640 = vmatprep.subr.mxu0 0.0
        %641 = vmatpush2.xpose.msra.mxu0 0.0
        %642 = vmatprep.subr.mxu0 0.0
        %643 = vmatpush2.xpose.msra.mxu0 0.0
        %644 = vmatprep.subr.mxu0 0.0
        %645 = vmatpush2.xpose.msra.mxu0 0.0
        %646 = vmatprep.subr.mxu0 0.0
        %647 = vmatpush2.xpose.msra.mxu0 0.0
        %648 = vmatprep.subr.mxu0 0.0
        %649 = vmatpush2.xpose.msra.mxu0 0.0
        %650 = vmatprep.subr.mxu0 0.0
        %651 = vmatpush2.xpose.msra.mxu0 0.0
        %652 = vmatprep.subr.mxu0 0.0
        %653 = vmatpush2.xpose.msra.mxu0 0.0
        %654 = vmatprep.subr.mxu0 0.0
        %655 = vmatpush2.xpose.msra.mxu0 0.0
        %656 = vmatprep.subr.mxu0 0.0
        %657 = vmatpush2.xpose.msra.mxu0 0.0
        %658 = vmatprep.subr.mxu0 0.0
        %659 = vmatpush2.xpose.msra.mxu0 0.0
        %660 = vmatprep.mubr.f32.mxu0 0.0
        %661 = vmatmul.mubr.f32.gmra.mxu0 %v555
        %v662 = vpop.f32.mrf.mxu0
        %v663 = vadd.f32 %v552, %v662
        %v664 = vpop.f32.mrf.mxu0
        %665 = vmatprep.mubr.f32.mxu0 0.0
        %666 = vmatmul.mubr.f32.gmra.mxu0 %v558
        %v667 = vpop.f32.mrf.mxu0
        %v668 = vadd.f32 %v552, %v667
        %v669 = vpop.f32.mrf.mxu0
        %670 = vdwg.mxu0
        %673 = vrot.lane.b32.xlu0 %v663, 120
        %v674 = vpop.permute.xlu0 %673
        %675 = vrot.lane.b32.xlu0 %v668, 120
        %v676 = vpop.permute.xlu0 %675
        %677 = vrot.lane.b32.xlu0 %v663, 112
        %v678 = vpop.permute.xlu0 %677
        %679 = vrot.lane.b32.xlu0 %v668, 112
        %v680 = vpop.permute.xlu0 %679
        %681 = vrot.lane.b32.xlu0 %v663, 104
        %v682 = vpop.permute.xlu0 %681
        %683 = vrot.lane.b32.xlu0 %v668, 104
        %v684 = vpop.permute.xlu0 %683
        %v685 = vld [vmem:[%s1] sm:$0xff]
        %v686 = vld [vmem:[%s1 + $0x8] sm:$0xff]
        %v687 = vld [vmem:[%s1 + $0x10] sm:$0xff]
        %v688 = vld [vmem:[%s1 + $0x18] sm:$0xff]
        %v689 = vld [vmem:[%s1 + $0x20] sm:$0xff]
        %v690 = vld [vmem:[%s1 + $0x28] sm:$0xff]
        %v691 = vld [vmem:[%s1 + $0x30] sm:$0xff]
        %v692 = vld [vmem:[%s1 + $0x38] sm:$0xff]
        %693 = vrot.lane.b32.xlu0 %v663, 96
        %v694 = vpop.permute.xlu0 %693
        %695 = vrot.lane.b32.xlu0 %v668, 96
        %v696 = vpop.permute.xlu0 %695
        %697 = vrot.lane.b32.xlu0 %v674, 96
        %v698 = vpop.permute.xlu0 %697
        %699 = vrot.lane.b32.xlu0 %v676, 96
        %v700 = vpop.permute.xlu0 %699
        %701 = vrot.lane.b32.xlu0 %v678, 96
        %v702 = vpop.permute.xlu0 %701
        %703 = vrot.lane.b32.xlu0 %v680, 96
        %v704 = vpop.permute.xlu0 %703
        %705 = vrot.lane.b32.xlu0 %v682, 96
        %v706 = vpop.permute.xlu0 %705
        %707 = vrot.lane.b32.xlu0 %v684, 96
        %v708 = vpop.permute.xlu0 %707
        %vm709 = vcmask 64512
        %v710 = vsel %vm709, %v663, 0
        %v712 = vsel %vm709, %v668, 0
        %v714 = vsel %vm709, %v674, 0
        %v716 = vsel %vm709, %v676, 0
        %v718 = vsel %vm709, %v678, 0
        %v720 = vsel %vm709, %v680, 0
        %v722 = vsel %vm709, %v682, 0
        %v724 = vsel %vm709, %v684, 0
        %v726 = vsel %vm709, %v694, 0
        %v728 = vsel %vm709, %v696, 0
        %v730 = vsel %vm709, %v698, 0
        %v732 = vsel %vm709, %v700, 0
        %v734 = vsel %vm709, %v702, 0
        %v736 = vsel %vm709, %v704, 0
        %v738 = vsel %vm709, %v706, 0
        %v740 = vsel %vm709, %v708, 0
        %742 = vmatprep.subr.mxu0 0.0
        %743 = vmatpush1.xpose.msra.mxu0 0.0
        %744 = vmatprep.subr.mxu0 0.0
        %745 = vmatpush1.xpose.msra.mxu0 0.0
        %746 = vmatprep.subr.mxu0 0.0
        %747 = vmatpush1.xpose.msra.mxu0 0.0
        %748 = vmatprep.subr.mxu0 0.0
        %749 = vmatpush1.xpose.msra.mxu0 0.0
        %750 = vmatprep.subr.mxu0 0.0
        %751 = vmatpush1.xpose.msra.mxu0 0.0
        %752 = vmatprep.subr.mxu0 0.0
        %753 = vmatpush1.xpose.msra.mxu0 0.0
        %754 = vmatprep.subr.mxu0 0.0
        %755 = vmatpush1.xpose.msra.mxu0 0.0
        %756 = vmatprep.subr.mxu0 0.0
        %757 = vmatpush1.xpose.msra.mxu0 0.0
        %758 = vmatprep.subr.mxu0 0.0
        %759 = vmatpush1.xpose.msra.mxu0 %v740
        %760 = vmatprep.subr.mxu0 0.0
        %761 = vmatpush1.xpose.msra.mxu0 %v738
        %762 = vmatprep.subr.mxu0 0.0
        %763 = vmatpush1.xpose.msra.mxu0 %v736
        %764 = vmatprep.subr.mxu0 0.0
        %765 = vmatpush1.xpose.msra.mxu0 %v734
        %766 = vmatprep.subr.mxu0 0.0
        %767 = vmatpush1.xpose.msra.mxu0 %v732
        %768 = vmatprep.subr.mxu0 0.0
        %769 = vmatpush1.xpose.msra.mxu0 %v730
        %770 = vmatprep.subr.mxu0 0.0
        %771 = vmatpush1.xpose.msra.mxu0 %v728
        %772 = vmatprep.subr.mxu0 0.0
        %773 = vmatpush1.xpose.msra.mxu0 %v726
        %774 = vmatprep.subr.mxu0 0.0
        %775 = vmatpush2.xpose.msra.mxu0 0.0
        %776 = vmatprep.subr.mxu0 0.0
        %777 = vmatpush2.xpose.msra.mxu0 0.0
        %778 = vmatprep.subr.mxu0 0.0
        %779 = vmatpush2.xpose.msra.mxu0 0.0
        %780 = vmatprep.subr.mxu0 0.0
        %781 = vmatpush2.xpose.msra.mxu0 0.0
        %782 = vmatprep.subr.mxu0 0.0
        %783 = vmatpush2.xpose.msra.mxu0 0.0
        %784 = vmatprep.subr.mxu0 0.0
        %785 = vmatpush2.xpose.msra.mxu0 0.0
        %786 = vmatprep.subr.mxu0 0.0
        %787 = vmatpush2.xpose.msra.mxu0 0.0
        %788 = vmatprep.subr.mxu0 0.0
        %789 = vmatpush2.xpose.msra.mxu0 0.0
        %790 = vmatprep.subr.mxu0 0.0
        %791 = vmatpush2.xpose.msra.mxu0 0.0
        %792 = vmatprep.subr.mxu0 0.0
        %793 = vmatpush2.xpose.msra.mxu0 0.0
        %794 = vmatprep.subr.mxu0 0.0
        %795 = vmatpush2.xpose.msra.mxu0 0.0
        %796 = vmatprep.subr.mxu0 0.0
        %797 = vmatpush2.xpose.msra.mxu0 0.0
        %798 = vmatprep.subr.mxu0 0.0
        %799 = vmatpush2.xpose.msra.mxu0 0.0
        %800 = vmatprep.subr.mxu0 0.0
        %801 = vmatpush2.xpose.msra.mxu0 0.0
        %802 = vmatprep.subr.mxu0 0.0
        %803 = vmatpush2.xpose.msra.mxu0 0.0
        %804 = vmatprep.subr.mxu0 0.0
        %805 = vmatpush2.xpose.msra.mxu0 0.0
        %806 = vmatprep.mubr.f32.mxu0 0.0
        %807 = vmatmul.mubr.f32.gmra.mxu0 %v710
        %v808 = vpop.f32.mrf.mxu0
        %v809 = vadd.f32 %v685, %v808
        %v810 = vpop.f32.mrf.mxu0
        %811 = vmatprep.mubr.f32.mxu0 0.0
        %812 = vmatmul.mubr.f32.gmra.mxu0 %v712
        %v813 = vpop.f32.mrf.mxu0
        %v814 = vadd.f32 %v686, %v813
        %v815 = vpop.f32.mrf.mxu0
        %816 = vmatprep.mubr.f32.mxu0 0.0
        %817 = vmatmul.mubr.f32.gmra.mxu0 %v714
        %v818 = vpop.f32.mrf.mxu0
        %v819 = vadd.f32 %v687, %v818
        %v820 = vpop.f32.mrf.mxu0
        %821 = vmatprep.mubr.f32.mxu0 0.0
        %822 = vmatmul.mubr.f32.gmra.mxu0 %v716
        %v823 = vpop.f32.mrf.mxu0
        %v824 = vadd.f32 %v688, %v823
        %v825 = vpop.f32.mrf.mxu0
        %826 = vmatprep.mubr.f32.mxu0 0.0
        %827 = vmatmul.mubr.f32.gmra.mxu0 %v718
        %v828 = vpop.f32.mrf.mxu0
        %v829 = vadd.f32 %v689, %v828
        %v830 = vpop.f32.mrf.mxu0
        %831 = vmatprep.mubr.f32.mxu0 0.0
        %832 = vmatmul.mubr.f32.gmra.mxu0 %v720
        %v833 = vpop.f32.mrf.mxu0
        %v834 = vadd.f32 %v690, %v833
        %v835 = vpop.f32.mrf.mxu0
        %836 = vmatprep.mubr.f32.mxu0 0.0
        %837 = vmatmul.mubr.f32.gmra.mxu0 %v722
        %v838 = vpop.f32.mrf.mxu0
        %v839 = vadd.f32 %v691, %v838
        %v840 = vpop.f32.mrf.mxu0
        %841 = vmatprep.mubr.f32.mxu0 0.0
        %842 = vmatmul.mubr.f32.gmra.mxu0 %v724
        %v843 = vpop.f32.mrf.mxu0
        %v844 = vadd.f32 %v692, %v843
        %v845 = vpop.f32.mrf.mxu0
        %846 = vdwg.mxu0
        %vm847 = vcmask 523264
        %v848 = vsel %vm847, %v809, -inf
        %849 = vmax.xlane.f32.xlu0 %v848
        %v850 = vpop.xlane.xlu0 %849
        %v851 = vsel %vm847, %v814, -inf
        %852 = vmax.xlane.f32.xlu0 %v851
        %v853 = vpop.xlane.xlu0 %852
        %v854 = vsel %vm847, %v819, -inf
        %855 = vmax.xlane.f32.xlu0 %v854
        %v856 = vpop.xlane.xlu0 %855
        %v857 = vsel %vm847, %v824, -inf
        %858 = vmax.xlane.f32.xlu0 %v857
        %v859 = vpop.xlane.xlu0 %858
        %v860 = vsel %vm847, %v829, -inf
        %861 = vmax.xlane.f32.xlu0 %v860
        %v862 = vpop.xlane.xlu0 %861
        %v863 = vsel %vm847, %v834, -inf
        %864 = vmax.xlane.f32.xlu0 %v863
        %v865 = vpop.xlane.xlu0 %864
        %v866 = vsel %vm847, %v839, -inf
        %867 = vmax.xlane.f32.xlu0 %v866
        %v868 = vpop.xlane.xlu0 %867
        %v869 = vsel %vm847, %v844, -inf
        %870 = vmax.xlane.f32.xlu0 %v869
        %v871 = vpop.xlane.xlu0 %870
        %v872 = vsub.f32 %v809, %v850
        %v873 = vsub.f32 %v814, %v853
        %v874 = vsub.f32 %v819, %v856
        %v875 = vsub.f32 %v824, %v859
        %v876 = vsub.f32 %v829, %v862
        %v877 = vsub.f32 %v834, %v865
        %v878 = vsub.f32 %v839, %v868
        %v879 = vsub.f32 %v844, %v871
        %v880 = vmul.f32 %v872, 1.442695
        %v881 = vpow.pop %v880
        %v882 = vmul.f32 %v873, 1.442695
        %v883 = vpow.pop %v882
        %v884 = vmul.f32 %v874, 1.442695
        %v885 = vpow.pop %v884
        %v886 = vmul.f32 %v875, 1.442695
        %v887 = vpow.pop %v886
        %v888 = vmul.f32 %v876, 1.442695
        %v889 = vpow.pop %v888
        %v890 = vmul.f32 %v877, 1.442695
        %v891 = vpow.pop %v890
        %v892 = vmul.f32 %v878, 1.442695
        %v893 = vpow.pop %v892
        %v894 = vmul.f32 %v879, 1.442695
        %v895 = vpow.pop %v894
        %v896 = vsel %vm847, %v881, 0.0
        %897 = vadd.xlane.f32.xlu0 %v896
        %v898 = vpop.xlane.xlu0 %897
        %v899 = vsel %vm847, %v883, 0.0
        %900 = vadd.xlane.f32.xlu0 %v899
        %v901 = vpop.xlane.xlu0 %900
        %v902 = vsel %vm847, %v885, 0.0
        %903 = vadd.xlane.f32.xlu0 %v902
        %v904 = vpop.xlane.xlu0 %903
        %v905 = vsel %vm847, %v887, 0.0
        %906 = vadd.xlane.f32.xlu0 %v905
        %v907 = vpop.xlane.xlu0 %906
        %v908 = vsel %vm847, %v889, 0.0
        %909 = vadd.xlane.f32.xlu0 %v908
        %v910 = vpop.xlane.xlu0 %909
        %v911 = vsel %vm847, %v891, 0.0
        %912 = vadd.xlane.f32.xlu0 %v911
        %v913 = vpop.xlane.xlu0 %912
        %v914 = vsel %vm847, %v893, 0.0
        %915 = vadd.xlane.f32.xlu0 %v914
        %v916 = vpop.xlane.xlu0 %915
        %v917 = vsel %vm847, %v895, 0.0
        %918 = vadd.xlane.f32.xlu0 %v917
        %v919 = vpop.xlane.xlu0 %918
        %v920 = vrcp.pop %v898
        %v921 = vmul.f32 %v881, %v920
        %v922 = vrcp.pop %v901
        %v923 = vmul.f32 %v883, %v922
        %v924 = vrcp.pop %v904
        %v925 = vmul.f32 %v885, %v924
        %v926 = vrcp.pop %v907
        %v927 = vmul.f32 %v887, %v926
        %v928 = vrcp.pop %v910
        %v929 = vmul.f32 %v889, %v928
        %v930 = vrcp.pop %v913
        %v931 = vmul.f32 %v891, %v930
        %v932 = vrcp.pop %v916
        %v933 = vmul.f32 %v893, %v932
        %v934 = vrcp.pop %v919
        %v935 = vmul.f32 %v895, %v934
        %936 = vrot.lane.b32.xlu0 %v663, 64
        %v937 = vpop.permute.xlu0 %936
        %938 = vrot.lane.b32.xlu0 %v668, 64
        %v939 = vpop.permute.xlu0 %938
        %940 = vrot.lane.b32.xlu0 %v674, 64
        %v941 = vpop.permute.xlu0 %940
        %942 = vrot.lane.b32.xlu0 %v676, 64
        %v943 = vpop.permute.xlu0 %942
        %944 = vrot.lane.b32.xlu0 %v678, 64
        %v945 = vpop.permute.xlu0 %944
        %946 = vrot.lane.b32.xlu0 %v680, 64
        %v947 = vpop.permute.xlu0 %946
        %948 = vrot.lane.b32.xlu0 %v682, 64
        %v949 = vpop.permute.xlu0 %948
        %950 = vrot.lane.b32.xlu0 %v684, 64
        %v951 = vpop.permute.xlu0 %950
        %v961 = vsel %vm847, %v921, 0
        %v964 = vsel %vm847, %v923, 0
        %v967 = vsel %vm847, %v925, 0
        %v970 = vsel %vm847, %v927, 0
        %v973 = vsel %vm847, %v929, 0
        %v976 = vsel %vm847, %v931, 0
        %v979 = vsel %vm847, %v933, 0
        %v982 = vsel %vm847, %v935, 0
        %984 = vmatprep.subr.mxu0 0.0
        %985 = vmatpush1.msra.mxu0 0.0
        %986 = vmatprep.subr.mxu0 0.0
        %987 = vmatpush1.msra.mxu0 0.0
        %988 = vmatprep.subr.mxu0 0.0
        %989 = vmatpush1.msra.mxu0 0.0
        %990 = vmatprep.subr.mxu0 0.0
        %991 = vmatpush1.msra.mxu0 0.0
        %992 = vmatprep.subr.mxu0 0.0
        %993 = vmatpush1.msra.mxu0 0.0
        %994 = vmatprep.subr.mxu0 0.0
        %995 = vmatpush1.msra.mxu0 0.0
        %996 = vmatprep.subr.mxu0 0.0
        %997 = vmatpush1.msra.mxu0 0.0
        %998 = vmatprep.subr.mxu0 0.0
        %999 = vmatpush1.msra.mxu0 0.0
        %1000 = vmatprep.subr.mxu0 0.0
        %1001 = vmatpush1.msra.mxu0 %v951
        %1002 = vmatprep.subr.mxu0 0.0
        %1003 = vmatpush1.msra.mxu0 %v949
        %1004 = vmatprep.subr.mxu0 0.0
        %1005 = vmatpush1.msra.mxu0 %v947
        %1006 = vmatprep.subr.mxu0 0.0
        %1007 = vmatpush1.msra.mxu0 %v945
        %1008 = vmatprep.subr.mxu0 0.0
        %1009 = vmatpush1.msra.mxu0 %v943
        %1010 = vmatprep.subr.mxu0 0.0
        %1011 = vmatpush1.msra.mxu0 %v941
        %1012 = vmatprep.subr.mxu0 0.0
        %1013 = vmatpush1.msra.mxu0 %v939
        %1014 = vmatprep.subr.mxu0 0.0
        %1015 = vmatpush1.msra.mxu0 %v937
        %1016 = vmatprep.subr.mxu0 0.0
        %1017 = vmatpush2.msra.mxu0 0.0
        %1018 = vmatprep.subr.mxu0 0.0
        %1019 = vmatpush2.msra.mxu0 0.0
        %1020 = vmatprep.subr.mxu0 0.0
        %1021 = vmatpush2.msra.mxu0 0.0
        %1022 = vmatprep.subr.mxu0 0.0
        %1023 = vmatpush2.msra.mxu0 0.0
        %1024 = vmatprep.subr.mxu0 0.0
        %1025 = vmatpush2.msra.mxu0 0.0
        %1026 = vmatprep.subr.mxu0 0.0
        %1027 = vmatpush2.msra.mxu0 0.0
        %1028 = vmatprep.subr.mxu0 0.0
        %1029 = vmatpush2.msra.mxu0 0.0
        %1030 = vmatprep.subr.mxu0 0.0
        %1031 = vmatpush2.msra.mxu0 0.0
        %1032 = vmatprep.subr.mxu0 0.0
        %1033 = vmatpush2.msra.mxu0 0.0
        %1034 = vmatprep.subr.mxu0 0.0
        %1035 = vmatpush2.msra.mxu0 0.0
        %1036 = vmatprep.subr.mxu0 0.0
        %1037 = vmatpush2.msra.mxu0 0.0
        %1038 = vmatprep.subr.mxu0 0.0
        %1039 = vmatpush2.msra.mxu0 0.0
        %1040 = vmatprep.subr.mxu0 0.0
        %1041 = vmatpush2.msra.mxu0 0.0
        %1042 = vmatprep.subr.mxu0 0.0
        %1043 = vmatpush2.msra.mxu0 0.0
        %1044 = vmatprep.subr.mxu0 0.0
        %1045 = vmatpush2.msra.mxu0 0.0
        %1046 = vmatprep.subr.mxu0 0.0
        %1047 = vmatpush2.msra.mxu0 0.0
        %1048 = vmatprep.mubr.f32.mxu0 0.0
        %1049 = vmatmul.mubr.f32.gmra.mxu0 %v961
        %v1050 = vpop.f32.mrf.mxu0
        %v1051 = vadd.f32 0.0, %v1050
        %v1052 = vpop.f32.mrf.mxu0
        %1053 = vmatprep.mubr.f32.mxu0 0.0
        %1054 = vmatmul.mubr.f32.gmra.mxu0 %v964
        %v1055 = vpop.f32.mrf.mxu0
        %v1056 = vadd.f32 0.0, %v1055
        %v1057 = vpop.f32.mrf.mxu0
        %1058 = vmatprep.mubr.f32.mxu0 0.0
        %1059 = vmatmul.mubr.f32.gmra.mxu0 %v967
        %v1060 = vpop.f32.mrf.mxu0
        %v1061 = vadd.f32 0.0, %v1060
        %v1062 = vpop.f32.mrf.mxu0
        %1063 = vmatprep.mubr.f32.mxu0 0.0
        %1064 = vmatmul.mubr.f32.gmra.mxu0 %v970
        %v1065 = vpop.f32.mrf.mxu0
        %v1066 = vadd.f32 0.0, %v1065
        %v1067 = vpop.f32.mrf.mxu0
        %1068 = vmatprep.mubr.f32.mxu0 0.0
        %1069 = vmatmul.mubr.f32.gmra.mxu0 %v973
        %v1070 = vpop.f32.mrf.mxu0
        %v1071 = vadd.f32 0.0, %v1070
        %v1072 = vpop.f32.mrf.mxu0
        %1073 = vmatprep.mubr.f32.mxu0 0.0
        %1074 = vmatmul.mubr.f32.gmra.mxu0 %v976
        %v1075 = vpop.f32.mrf.mxu0
        %v1076 = vadd.f32 0.0, %v1075
        %v1077 = vpop.f32.mrf.mxu0
        %1078 = vmatprep.mubr.f32.mxu0 0.0
        %1079 = vmatmul.mubr.f32.gmra.mxu0 %v979
        %v1080 = vpop.f32.mrf.mxu0
        %v1081 = vadd.f32 0.0, %v1080
        %v1082 = vpop.f32.mrf.mxu0
        %1083 = vmatprep.mubr.f32.mxu0 0.0
        %1084 = vmatmul.mubr.f32.gmra.mxu0 %v982
        %v1085 = vpop.f32.mrf.mxu0
        %v1086 = vadd.f32 0.0, %v1085
        %v1087 = vpop.f32.mrf.mxu0
        %1088 = vdwg.mxu0
        %1091 = vrot.lane.b32.xlu0 %v1061, 8
        %v1092 = vpop.permute.xlu0 %1091
        %1093 = vrot.lane.b32.xlu0 %v1066, 8
        %v1094 = vpop.permute.xlu0 %1093
        %1099 = vrot.lane.b32.xlu0 %v1071, 16
        %v1100 = vpop.permute.xlu0 %1099
        %1101 = vrot.lane.b32.xlu0 %v1076, 16
        %v1102 = vpop.permute.xlu0 %1101
        %1107 = vrot.lane.b32.xlu0 %v1081, 24
        %v1108 = vpop.permute.xlu0 %1107
        %1109 = vrot.lane.b32.xlu0 %v1086, 24
        %v1110 = vpop.permute.xlu0 %1109
        %v1113 = vsel %vm709, %v1051, %v1092
        %v1114 = vsel %vm709, %v1056, %v1094
        %vm1115 = vcmask 130048
        %v1116 = vsel %vm1115, %v1113, %v1100
        %v1117 = vsel %vm1115, %v1114, %v1102
        %vm1118 = vcmask 195584
        %v1119 = vsel %vm1118, %v1116, %v1108
        %v1120 = vsel %vm1118, %v1117, %v1110
        %v1121 = vld [vmem:[%s437] sm:$0xff]
        %v1122 = vld [vmem:[%s437 + $0x8] sm:$0xff]
        %v1123 = vld [vmem:[%s437 + $0x10] sm:$0xff]
        %v1124 = vld [vmem:[%s437 + $0x18] sm:$0xff]
        %v1125 = vlaneseq
        %v1126 = vshrl.u32 %v1125, 7
        %v1127 = vsub.s32 6, %v1126
        %v1128 = vrot.slane %v468, %v1127
        %v1130 = vsel %vm495, %v1119, 0
        %v1133 = vsel %vm495, %v1120, 0
        %v1136 = vsel %vm495, %v1121, 0
        %v1139 = vsel %vm495, %v1122, 0
        %v1142 = vsel %vm495, %v1123, 0
        %v1145 = vsel %vm495, %v1124, 0
        %1147 = vmatprep.subr.mxu0 0.0
        %1148 = vmatpush1.xpose.msra.mxu0 0.0
        %1149 = vmatprep.subr.mxu0 0.0
        %1150 = vmatpush1.xpose.msra.mxu0 0.0
        %1151 = vmatprep.subr.mxu0 0.0
        %1152 = vmatpush1.xpose.msra.mxu0 0.0
        %1153 = vmatprep.subr.mxu0 0.0
        %1154 = vmatpush1.xpose.msra.mxu0 0.0
        %1155 = vmatprep.subr.mxu0 0.0
        %1156 = vmatpush1.xpose.msra.mxu0 0.0
        %1157 = vmatprep.subr.mxu0 0.0
        %1158 = vmatpush1.xpose.msra.mxu0 0.0
        %1159 = vmatprep.subr.mxu0 0.0
        %1160 = vmatpush1.xpose.msra.mxu0 0.0
        %1161 = vmatprep.subr.mxu0 0.0
        %1162 = vmatpush1.xpose.msra.mxu0 0.0
        %1163 = vmatprep.subr.mxu0 0.0
        %1164 = vmatpush1.xpose.msra.mxu0 0.0
        %1165 = vmatprep.subr.mxu0 0.0
        %1166 = vmatpush1.xpose.msra.mxu0 0.0
        %1167 = vmatprep.subr.mxu0 0.0
        %1168 = vmatpush1.xpose.msra.mxu0 0.0
        %1169 = vmatprep.subr.mxu0 0.0
        %1170 = vmatpush1.xpose.msra.mxu0 0.0
        %1171 = vmatprep.subr.mxu0 0.0
        %1172 = vmatpush1.xpose.msra.mxu0 %v1145
        %1173 = vmatprep.subr.mxu0 0.0
        %1174 = vmatpush1.xpose.msra.mxu0 %v1142
        %1175 = vmatprep.subr.mxu0 0.0
        %1176 = vmatpush1.xpose.msra.mxu0 %v1139
        %1177 = vmatprep.subr.mxu0 0.0
        %1178 = vmatpush1.xpose.msra.mxu0 %v1136
        %1179 = vmatprep.subr.mxu0 0.0
        %1180 = vmatpush2.xpose.msra.mxu0 0.0
        %1181 = vmatprep.subr.mxu0 0.0
        %1182 = vmatpush2.xpose.msra.mxu0 0.0
        %1183 = vmatprep.subr.mxu0 0.0
        %1184 = vmatpush2.xpose.msra.mxu0 0.0
        %1185 = vmatprep.subr.mxu0 0.0
        %1186 = vmatpush2.xpose.msra.mxu0 0.0
        %1187 = vmatprep.subr.mxu0 0.0
        %1188 = vmatpush2.xpose.msra.mxu0 0.0
        %1189 = vmatprep.subr.mxu0 0.0
        %1190 = vmatpush2.xpose.msra.mxu0 0.0
        %1191 = vmatprep.subr.mxu0 0.0
        %1192 = vmatpush2.xpose.msra.mxu0 0.0
        %1193 = vmatprep.subr.mxu0 0.0
        %1194 = vmatpush2.xpose.msra.mxu0 0.0
        %1195 = vmatprep.subr.mxu0 0.0
        %1196 = vmatpush2.xpose.msra.mxu0 0.0
        %1197 = vmatprep.subr.mxu0 0.0
        %1198 = vmatpush2.xpose.msra.mxu0 0.0
        %1199 = vmatprep.subr.mxu0 0.0
        %1200 = vmatpush2.xpose.msra.mxu0 0.0
        %1201 = vmatprep.subr.mxu0 0.0
        %1202 = vmatpush2.xpose.msra.mxu0 0.0
        %1203 = vmatprep.subr.mxu0 0.0
        %1204 = vmatpush2.xpose.msra.mxu0 0.0
        %1205 = vmatprep.subr.mxu0 0.0
        %1206 = vmatpush2.xpose.msra.mxu0 0.0
        %1207 = vmatprep.subr.mxu0 0.0
        %1208 = vmatpush2.xpose.msra.mxu0 0.0
        %1209 = vmatprep.subr.mxu0 0.0
        %1210 = vmatpush2.xpose.msra.mxu0 0.0
        %1211 = vmatprep.mubr.f32.mxu0 0.0
        %1212 = vmatmul.mubr.f32.gmra.mxu0 %v1130
        %v1213 = vpop.f32.mrf.mxu0
        %v1214 = vadd.f32 %v1128, %v1213
        %v1215 = vpop.f32.mrf.mxu0
        %1216 = vmatprep.mubr.f32.mxu0 0.0
        %1217 = vmatmul.mubr.f32.gmra.mxu0 %v1133
        %v1218 = vpop.f32.mrf.mxu0
        %v1219 = vadd.f32 %v1128, %v1218
        %v1220 = vpop.f32.mrf.mxu0
        %1221 = vdwg.mxu0
        %v1222 = vadd.f32 %v466, %v1214
        %v1223 = vadd.f32 %v467, %v1219
        %v1224 = vsel %vm495, %v1222, 0.0
        %1225 = vadd.xlane.f32.xlu0 %v1224
        %v1226 = vpop.xlane.xlu0 %1225
        %v1227 = vsel %vm495, %v1223, 0.0
        %1228 = vadd.xlane.f32.xlu0 %v1227
        %v1229 = vpop.xlane.xlu0 %1228
        %v1230 = vmul.f32 %v1226, %v502
        %v1231 = vmul.f32 %v1229, %v502
        %v1232 = vsub.f32 %v1222, %v1230
        %v1233 = vsub.f32 %v1223, %v1231
        %v1234 = vmul.f32 %v1232, %v1232
        %v1235 = vmul.f32 %v1233, %v1233
        %v1236 = vsel %vm495, %v1234, 0.0
        %1237 = vadd.xlane.f32.xlu0 %v1236
        %v1238 = vpop.xlane.xlu0 %1237
        %v1239 = vsel %vm495, %v1235, 0.0
        %1240 = vadd.xlane.f32.xlu0 %v1239
        %v1241 = vpop.xlane.xlu0 %1240
        %v1242 = vmul.f32 %v1238, %v502
        %v1243 = vmul.f32 %v1241, %v502
        %v1244 = vadd.f32 %v1242, 1e-05
        %v1245 = vadd.f32 %v1243, 1e-05
        %v1246 = vrsqrt.pop %v1244
        %v1247 = vrsqrt.pop %v1245
        %v1248 = vmul.f32 %v1232, %v1246
        %v1249 = vmul.f32 %v1233, %v1247
        %v1250 = vlaneseq
        %v1251 = vshrl.u32 %v1250, 7
        %v1252 = vsub.s32 2, %v1251
        %v1253 = vrot.slane %v468, %v1252
        %v1254 = vmul.f32 %v1248, %v1253
        %v1255 = vmul.f32 %v1249, %v1253
        %v1256 = vlaneseq
        %v1257 = vshrl.u32 %v1256, 7
        %v1258 = vsub.s32 3, %v1257
        %v1259 = vrot.slane %v468, %v1258
        %v1260 = vadd.f32 %v1254, %v1259
        %v1261 = vadd.f32 %v1255, %v1259
        %v1262 = vlaneseq
        %v1263 = vshrl.u32 %v1262, 7
        %v1264 = vsub.s32 0, %v1263
        %v1265 = vrot.slane %v486, %v1264
        %v1267 = vsel %vm495, %v1260, 0
        %v1270 = vsel %vm495, %v1261, 0
        %v1273 = vsel %vm495, %v470, 0
        %v1276 = vsel %vm495, %v471, 0
        %v1279 = vsel %vm495, %v472, 0
        %v1282 = vsel %vm495, %v473, 0
        %v1285 = vsel %vm495, %v474, 0
        %v1288 = vsel %vm495, %v475, 0
        %v1291 = vsel %vm495, %v476, 0
        %v1294 = vsel %vm495, %v477, 0
        %1296 = vmatprep.subr.mxu0 0.0
        %1297 = vmatpush1.xpose.msra.mxu0 0.0
        %1298 = vmatprep.subr.mxu0 0.0
        %1299 = vmatpush1.xpose.msra.mxu0 0.0
        %1300 = vmatprep.subr.mxu0 0.0
        %1301 = vmatpush1.xpose.msra.mxu0 0.0
        %1302 = vmatprep.subr.mxu0 0.0
        %1303 = vmatpush1.xpose.msra.mxu0 0.0
        %1304 = vmatprep.subr.mxu0 0.0
        %1305 = vmatpush1.xpose.msra.mxu0 0.0
        %1306 = vmatprep.subr.mxu0 0.0
        %1307 = vmatpush1.xpose.msra.mxu0 0.0
        %1308 = vmatprep.subr.mxu0 0.0
        %1309 = vmatpush1.xpose.msra.mxu0 0.0
        %1310 = vmatprep.subr.mxu0 0.0
        %1311 = vmatpush1.xpose.msra.mxu0 0.0
        %1312 = vmatprep.subr.mxu0 0.0
        %1313 = vmatpush1.xpose.msra.mxu0 %v1294
        %1314 = vmatprep.subr.mxu0 0.0
        %1315 = vmatpush1.xpose.msra.mxu0 %v1291
        %1316 = vmatprep.subr.mxu0 0.0
        %1317 = vmatpush1.xpose.msra.mxu0 %v1288
        %1318 = vmatprep.subr.mxu0 0.0
        %1319 = vmatpush1.xpose.msra.mxu0 %v1285
        %1320 = vmatprep.subr.mxu0 0.0
        %1321 = vmatpush1.xpose.msra.mxu0 %v1282
        %1322 = vmatprep.subr.mxu0 0.0
        %1323 = vmatpush1.xpose.msra.mxu0 %v1279
        %1324 = vmatprep.subr.mxu0 0.0
        %1325 = vmatpush1.xpose.msra.mxu0 %v1276
        %1326 = vmatprep.subr.mxu0 0.0
        %1327 = vmatpush1.xpose.msra.mxu0 %v1273
        %1328 = vmatprep.subr.mxu0 0.0
        %1329 = vmatpush2.xpose.msra.mxu0 0.0
        %1330 = vmatprep.subr.mxu0 0.0
        %1331 = vmatpush2.xpose.msra.mxu0 0.0
        %1332 = vmatprep.subr.mxu0 0.0
        %1333 = vmatpush2.xpose.msra.mxu0 0.0
        %1334 = vmatprep.subr.mxu0 0.0
        %1335 = vmatpush2.xpose.msra.mxu0 0.0
        %1336 = vmatprep.subr.mxu0 0.0
        %1337 = vmatpush2.xpose.msra.mxu0 0.0
        %1338 = vmatprep.subr.mxu0 0.0
        %1339 = vmatpush2.xpose.msra.mxu0 0.0
        %1340 = vmatprep.subr.mxu0 0.0
        %1341 = vmatpush2.xpose.msra.mxu0 0.0
        %1342 = vmatprep.subr.mxu0 0.0
        %1343 = vmatpush2.xpose.msra.mxu0 0.0
        %1344 = vmatprep.subr.mxu0 0.0
        %1345 = vmatpush2.xpose.msra.mxu0 0.0
        %1346 = vmatprep.subr.mxu0 0.0
        %1347 = vmatpush2.xpose.msra.mxu0 0.0
        %1348 = vmatprep.subr.mxu0 0.0
        %1349 = vmatpush2.xpose.msra.mxu0 0.0
        %1350 = vmatprep.subr.mxu0 0.0
        %1351 = vmatpush2.xpose.msra.mxu0 0.0
        %1352 = vmatprep.subr.mxu0 0.0
        %1353 = vmatpush2.xpose.msra.mxu0 0.0
        %1354 = vmatprep.subr.mxu0 0.0
        %1355 = vmatpush2.xpose.msra.mxu0 0.0
        %1356 = vmatprep.subr.mxu0 0.0
        %1357 = vmatpush2.xpose.msra.mxu0 0.0
        %1358 = vmatprep.subr.mxu0 0.0
        %1359 = vmatpush2.xpose.msra.mxu0 0.0
        %1360 = vmatprep.mubr.f32.mxu0 0.0
        %1361 = vmatmul.mubr.f32.gmra.mxu0 %v1267
        %v1362 = vpop.f32.mrf.mxu0
        %v1363 = vadd.f32 %v1265, %v1362
        %v1364 = vpop.f32.mrf.mxu0
        %1365 = vmatprep.mubr.f32.mxu0 0.0
        %1366 = vmatmul.mubr.f32.gmra.mxu0 %v1270
        %v1367 = vpop.f32.mrf.mxu0
        %v1368 = vadd.f32 %v1265, %v1367
        %v1369 = vpop.f32.mrf.mxu0
        %1370 = vdwg.mxu0
        %v1371 = vmul.f32 %v1363, 0.5
        %v1372 = vmul.f32 %v1368, 0.5
        %v1373 = vmul.f32 %v1363, 0.70710677
        %v1374 = vmul.f32 %v1368, 0.70710677
        %vm1375 = vcmp.ge.f32.partialorder %v1373, 0.0
        %vm1376 = vcmp.ge.f32.partialorder %v1374, 0.0
        %v1377 = vsel %vm1375, 1.0, -1.0
        %v1378 = vsel %vm1376, 1.0, -1.0
        %v1379 = vand.u32 2147483647, %v1373
        %v1380 = vand.u32 2147483647, %v1374
        %v1381 = vmul.f32 %v1379, 0.3275911
        %v1382 = vmul.f32 %v1380, 0.3275911
        %v1383 = vadd.f32 %v1381, 1.0
        %v1384 = vadd.f32 %v1382, 1.0
        %v1385 = vrcp.pop %v1383
        %v1386 = vmul.f32 1.0, %v1385
        %v1387 = vrcp.pop %v1384
        %v1388 = vmul.f32 1.0, %v1387
        %v1389 = vmul.f32 %v1386, 1.0614054
        %v1390 = vmul.f32 %v1388, 1.0614054
        %v1391 = vadd.f32 %v1389, -1.4531521
        %v1392 = vadd.f32 %v1390, -1.4531521
        %v1393 = vmul.f32 %v1391, %v1386
        %v1394 = vmul.f32 %v1392, %v1388
        %v1395 = vadd.f32 %v1393, 1.4214138
        %v1396 = vadd.f32 %v1394, 1.4214138
        %v1397 = vmul.f32 %v1395, %v1386
        %v1398 = vmul.f32 %v1396, %v1388
        %v1399 = vadd.f32 %v1397, -0.28449672
        %v1400 = vadd.f32 %v1398, -0.28449672
        %v1401 = vmul.f32 %v1399, %v1386
        %v1402 = vmul.f32 %v1400, %v1388
        %v1403 = vadd.f32 %v1401, 0.2548296
        %v1404 = vadd.f32 %v1402, 0.2548296
        %v1405 = vmul.f32 %v1403, %v1386
        %v1406 = vmul.f32 %v1404, %v1388
        %v1407 = vsub.f32 0.0, %v1379
        %v1408 = vsub.f32 0.0, %v1380
        %v1409 = vmul.f32 %v1407, %v1379
        %v1410 = vmul.f32 %v1408, %v1380
        %v1411 = vmul.f32 %v1409, 1.442695
        %v1412 = vpow.pop %v1411
        %v1413 = vmul.f32 %v1410, 1.442695
        %v1414 = vpow.pop %v1413
        %v1415 = vmul.f32 %v1405, %v1412
        %v1416 = vmul.f32 %v1406, %v1414
        %v1417 = vsub.f32 1.0, %v1415
        %v1418 = vsub.f32 1.0, %v1416
        %v1419 = vmul.f32 %v1377, %v1417
        %v1420 = vmul.f32 %v1378, %v1418
        %v1421 = vadd.f32 %v1419, 1.0
        %v1422 = vadd.f32 %v1420, 1.0
        %v1423 = vmul.f32 %v1371, %v1421
        %v1424 = vmul.f32 %v1372, %v1422
        %v1425 = vlaneseq
        %v1426 = vshrl.u32 %v1425, 7
        %v1427 = vsub.s32 7, %v1426
        %v1428 = vrot.slane %v468, %v1427
        %v1430 = vsel %vm847, %v1423, 0
        %v1433 = vsel %vm847, %v1424, 0
        %v1436 = vsel %vm847, %v487, 0
        %v1439 = vsel %vm847, %v488, 0
        %v1442 = vsel %vm847, %v489, 0
        %v1445 = vsel %vm847, %v490, 0
        %1447 = vmatprep.subr.mxu0 0.0
        %1448 = vmatpush1.xpose.msra.mxu0 0.0
        %1449 = vmatprep.subr.mxu0 0.0
        %1450 = vmatpush1.xpose.msra.mxu0 0.0
        %1451 = vmatprep.subr.mxu0 0.0
        %1452 = vmatpush1.xpose.msra.mxu0 0.0
        %1453 = vmatprep.subr.mxu0 0.0
        %1454 = vmatpush1.xpose.msra.mxu0 0.0
        %1455 = vmatprep.subr.mxu0 0.0
        %1456 = vmatpush1.xpose.msra.mxu0 0.0
        %1457 = vmatprep.subr.mxu0 0.0
        %1458 = vmatpush1.xpose.msra.mxu0 0.0
        %1459 = vmatprep.subr.mxu0 0.0
        %1460 = vmatpush1.xpose.msra.mxu0 0.0
        %1461 = vmatprep.subr.mxu0 0.0
        %1462 = vmatpush1.xpose.msra.mxu0 0.0
        %1463 = vmatprep.subr.mxu0 0.0
        %1464 = vmatpush1.xpose.msra.mxu0 0.0
        %1465 = vmatprep.subr.mxu0 0.0
        %1466 = vmatpush1.xpose.msra.mxu0 0.0
        %1467 = vmatprep.subr.mxu0 0.0
        %1468 = vmatpush1.xpose.msra.mxu0 0.0
        %1469 = vmatprep.subr.mxu0 0.0
        %1470 = vmatpush1.xpose.msra.mxu0 0.0
        %1471 = vmatprep.subr.mxu0 0.0
        %1472 = vmatpush1.xpose.msra.mxu0 %v1445
        %1473 = vmatprep.subr.mxu0 0.0
        %1474 = vmatpush1.xpose.msra.mxu0 %v1442
        %1475 = vmatprep.subr.mxu0 0.0
        %1476 = vmatpush1.xpose.msra.mxu0 %v1439
        %1477 = vmatprep.subr.mxu0 0.0
        %1478 = vmatpush1.xpose.msra.mxu0 %v1436
        %1479 = vmatprep.subr.mxu0 0.0
        %1480 = vmatpush2.xpose.msra.mxu0 0.0
        %1481 = vmatprep.subr.mxu0 0.0
        %1482 = vmatpush2.xpose.msra.mxu0 0.0
        %1483 = vmatprep.subr.mxu0 0.0
        %1484 = vmatpush2.xpose.msra.mxu0 0.0
        %1485 = vmatprep.subr.mxu0 0.0
        %1486 = vmatpush2.xpose.msra.mxu0 0.0
        %1487 = vmatprep.subr.mxu0 0.0
        %1488 = vmatpush2.xpose.msra.mxu0 0.0
        %1489 = vmatprep.subr.mxu0 0.0
        %1490 = vmatpush2.xpose.msra.mxu0 0.0
        %1491 = vmatprep.subr.mxu0 0.0
        %1492 = vmatpush2.xpose.msra.mxu0 0.0
        %1493 = vmatprep.subr.mxu0 0.0
        %1494 = vmatpush2.xpose.msra.mxu0 0.0
        %1495 = vmatprep.subr.mxu0 0.0
        %1496 = vmatpush2.xpose.msra.mxu0 0.0
        %1497 = vmatprep.subr.mxu0 0.0
        %1498 = vmatpush2.xpose.msra.mxu0 0.0
        %1499 = vmatprep.subr.mxu0 0.0
        %1500 = vmatpush2.xpose.msra.mxu0 0.0
        %1501 = vmatprep.subr.mxu0 0.0
        %1502 = vmatpush2.xpose.msra.mxu0 0.0
        %1503 = vmatprep.subr.mxu0 0.0
        %1504 = vmatpush2.xpose.msra.mxu0 0.0
        %1505 = vmatprep.subr.mxu0 0.0
        %1506 = vmatpush2.xpose.msra.mxu0 0.0
        %1507 = vmatprep.subr.mxu0 0.0
        %1508 = vmatpush2.xpose.msra.mxu0 0.0
        %1509 = vmatprep.subr.mxu0 0.0
        %1510 = vmatpush2.xpose.msra.mxu0 0.0
        %1511 = vmatprep.mubr.f32.mxu0 0.0
        %1512 = vmatmul.mubr.f32.gmra.mxu0 %v1430
        %v1513 = vpop.f32.mrf.mxu0
        %v1514 = vadd.f32 %v1428, %v1513
        %v1515 = vpop.f32.mrf.mxu0
        %1516 = vmatprep.mubr.f32.mxu0 0.0
        %1517 = vmatmul.mubr.f32.gmra.mxu0 %v1433
        %v1518 = vpop.f32.mrf.mxu0
        %v1519 = vadd.f32 %v1428, %v1518
        %v1520 = vpop.f32.mrf.mxu0
        %1521 = vdwg.mxu0
        %v1522 = vadd.f32 %v1222, %v1514
        %v1523 = vadd.f32 %v1223, %v1519
        %v1524 = vadd.f32 %v1522, %v466
        %v1525 = vadd.f32 %v1523, %v467
        %v1526 = vsel %vm495, %v1524, 0.0
        %1527 = vadd.xlane.f32.xlu0 %v1526
        %v1528 = vpop.xlane.xlu0 %1527
        %v1529 = vsel %vm495, %v1525, 0.0
        %1530 = vadd.xlane.f32.xlu0 %v1529
        %v1531 = vpop.xlane.xlu0 %1530
        %v1532 = vmul.f32 %v1528, %v502
        %v1533 = vmul.f32 %v1531, %v502
        %v1534 = vsub.f32 %v1524, %v1532
        %v1535 = vsub.f32 %v1525, %v1533
        %v1536 = vmul.f32 %v1534, %v1534
        %v1537 = vmul.f32 %v1535, %v1535
        %v1538 = vsel %vm495, %v1536, 0.0
        %1539 = vadd.xlane.f32.xlu0 %v1538
        %v1540 = vpop.xlane.xlu0 %1539
        %v1541 = vsel %vm495, %v1537, 0.0
        %1542 = vadd.xlane.f32.xlu0 %v1541
        %v1543 = vpop.xlane.xlu0 %1542
        %v1544 = vmul.f32 %v1540, %v502
        %v1545 = vmul.f32 %v1543, %v502
        %v1546 = vadd.f32 %v1544, 1e-05
        %v1547 = vadd.f32 %v1545, 1e-05
        %v1548 = vrsqrt.pop %v1546
        %v1549 = vrsqrt.pop %v1547
        %v1550 = vmul.f32 %v1534, %v1548
        %v1551 = vmul.f32 %v1535, %v1549
        %v1552 = vlaneseq
        %v1553 = vshrl.u32 %v1552, 7
        %v1554 = vsub.s32 4, %v1553
        %v1555 = vrot.slane %v468, %v1554
        %v1556 = vmul.f32 %v1550, %v1555
        %v1557 = vmul.f32 %v1551, %v1555
        %v1558 = vlaneseq
        %v1559 = vshrl.u32 %v1558, 7
        %v1560 = vsub.s32 5, %v1559
        %v1561 = vrot.slane %v468, %v1560
        %v1562 = vadd.f32 %v1556, %v1561
        %v1563 = vadd.f32 %v1557, %v1561
        %v1564 = vlaneseq
        %v1565 = vshrl.u32 %v1564, 7
        %v1566 = vsub.s32 1, %v1565
        %v1567 = vrot.slane %v486, %v1566
        %v1569 = vsel %vm495, %v1562, 0
        %v1572 = vsel %vm495, %v1563, 0
        %v1575 = vsel %vm495, %v478, 0
        %v1578 = vsel %vm495, %v479, 0
        %v1581 = vsel %vm495, %v480, 0
        %v1584 = vsel %vm495, %v481, 0
        %v1587 = vsel %vm495, %v482, 0
        %v1590 = vsel %vm495, %v483, 0
        %v1593 = vsel %vm495, %v484, 0
        %v1596 = vsel %vm495, %v485, 0
        %1598 = vmatprep.subr.mxu0 0.0
        %1599 = vmatpush1.xpose.msra.mxu0 0.0
        %1600 = vmatprep.subr.mxu0 0.0
        %1601 = vmatpush1.xpose.msra.mxu0 0.0
        %1602 = vmatprep.subr.mxu0 0.0
        %1603 = vmatpush1.xpose.msra.mxu0 0.0
        %1604 = vmatprep.subr.mxu0 0.0
        %1605 = vmatpush1.xpose.msra.mxu0 0.0
        %1606 = vmatprep.subr.mxu0 0.0
        %1607 = vmatpush1.xpose.msra.mxu0 0.0
        %1608 = vmatprep.subr.mxu0 0.0
        %1609 = vmatpush1.xpose.msra.mxu0 0.0
        %1610 = vmatprep.subr.mxu0 0.0
        %1611 = vmatpush1.xpose.msra.mxu0 0.0
        %1612 = vmatprep.subr.mxu0 0.0
        %1613 = vmatpush1.xpose.msra.mxu0 0.0
        %1614 = vmatprep.subr.mxu0 0.0
        %1615 = vmatpush1.xpose.msra.mxu0 %v1596
        %1616 = vmatprep.subr.mxu0 0.0
        %1617 = vmatpush1.xpose.msra.mxu0 %v1593
        %1618 = vmatprep.subr.mxu0 0.0
        %1619 = vmatpush1.xpose.msra.mxu0 %v1590
        %1620 = vmatprep.subr.mxu0 0.0
        %1621 = vmatpush1.xpose.msra.mxu0 %v1587
        %1622 = vmatprep.subr.mxu0 0.0
        %1623 = vmatpush1.xpose.msra.mxu0 %v1584
        %1624 = vmatprep.subr.mxu0 0.0
        %1625 = vmatpush1.xpose.msra.mxu0 %v1581
        %1626 = vmatprep.subr.mxu0 0.0
        %1627 = vmatpush1.xpose.msra.mxu0 %v1578
        %1628 = vmatprep.subr.mxu0 0.0
        %1629 = vmatpush1.xpose.msra.mxu0 %v1575
        %1630 = vmatprep.subr.mxu0 0.0
        %1631 = vmatpush2.xpose.msra.mxu0 0.0
        %1632 = vmatprep.subr.mxu0 0.0
        %1633 = vmatpush2.xpose.msra.mxu0 0.0
        %1634 = vmatprep.subr.mxu0 0.0
        %1635 = vmatpush2.xpose.msra.mxu0 0.0
        %1636 = vmatprep.subr.mxu0 0.0
        %1637 = vmatpush2.xpose.msra.mxu0 0.0
        %1638 = vmatprep.subr.mxu0 0.0
        %1639 = vmatpush2.xpose.msra.mxu0 0.0
        %1640 = vmatprep.subr.mxu0 0.0
        %1641 = vmatpush2.xpose.msra.mxu0 0.0
        %1642 = vmatprep.subr.mxu0 0.0
        %1643 = vmatpush2.xpose.msra.mxu0 0.0
        %1644 = vmatprep.subr.mxu0 0.0
        %1645 = vmatpush2.xpose.msra.mxu0 0.0
        %1646 = vmatprep.subr.mxu0 0.0
        %1647 = vmatpush2.xpose.msra.mxu0 0.0
        %1648 = vmatprep.subr.mxu0 0.0
        %1649 = vmatpush2.xpose.msra.mxu0 0.0
        %1650 = vmatprep.subr.mxu0 0.0
        %1651 = vmatpush2.xpose.msra.mxu0 0.0
        %1652 = vmatprep.subr.mxu0 0.0
        %1653 = vmatpush2.xpose.msra.mxu0 0.0
        %1654 = vmatprep.subr.mxu0 0.0
        %1655 = vmatpush2.xpose.msra.mxu0 0.0
        %1656 = vmatprep.subr.mxu0 0.0
        %1657 = vmatpush2.xpose.msra.mxu0 0.0
        %1658 = vmatprep.subr.mxu0 0.0
        %1659 = vmatpush2.xpose.msra.mxu0 0.0
        %1660 = vmatprep.subr.mxu0 0.0
        %1661 = vmatpush2.xpose.msra.mxu0 0.0
        %1662 = vmatprep.mubr.f32.mxu0 0.0
        %1663 = vmatmul.mubr.f32.gmra.mxu0 %v1569
        %v1664 = vpop.f32.mrf.mxu0
        %v1665 = vadd.f32 %v1567, %v1664
        %v1666 = vpop.f32.mrf.mxu0
        %1667 = vmatprep.mubr.f32.mxu0 0.0
        %1668 = vmatmul.mubr.f32.gmra.mxu0 %v1572
        %v1669 = vpop.f32.mrf.mxu0
        %v1670 = vadd.f32 %v1567, %v1669
        %v1671 = vpop.f32.mrf.mxu0
        %1672 = vdwg.mxu0
        %v1673 = vmul.f32 %v1665, 0.5
        %v1674 = vmul.f32 %v1670, 0.5
        %v1675 = vmul.f32 %v1665, 0.70710677
        %v1676 = vmul.f32 %v1670, 0.70710677
        %vm1677 = vcmp.ge.f32.partialorder %v1675, 0.0
        %vm1678 = vcmp.ge.f32.partialorder %v1676, 0.0
        %v1679 = vsel %vm1677, 1.0, -1.0
        %v1680 = vsel %vm1678, 1.0, -1.0
        %v1681 = vand.u32 2147483647, %v1675
        %v1682 = vand.u32 2147483647, %v1676
        %v1683 = vmul.f32 %v1681, 0.3275911
        %v1684 = vmul.f32 %v1682, 0.3275911
        %v1685 = vadd.f32 %v1683, 1.0
        %v1686 = vadd.f32 %v1684, 1.0
        %v1687 = vrcp.pop %v1685
        %v1688 = vmul.f32 1.0, %v1687
        %v1689 = vrcp.pop %v1686
        %v1690 = vmul.f32 1.0, %v1689
        %v1691 = vmul.f32 %v1688, 1.0614054
        %v1692 = vmul.f32 %v1690, 1.0614054
        %v1693 = vadd.f32 %v1691, -1.4531521
        %v1694 = vadd.f32 %v1692, -1.4531521
        %v1695 = vmul.f32 %v1693, %v1688
        %v1696 = vmul.f32 %v1694, %v1690
        %v1697 = vadd.f32 %v1695, 1.4214138
        %v1698 = vadd.f32 %v1696, 1.4214138
        %v1699 = vmul.f32 %v1697, %v1688
        %v1700 = vmul.f32 %v1698, %v1690
        %v1701 = vadd.f32 %v1699, -0.28449672
        %v1702 = vadd.f32 %v1700, -0.28449672
        %v1703 = vmul.f32 %v1701, %v1688
        %v1704 = vmul.f32 %v1702, %v1690
        %v1705 = vadd.f32 %v1703, 0.2548296
        %v1706 = vadd.f32 %v1704, 0.2548296
        %v1707 = vmul.f32 %v1705, %v1688
        %v1708 = vmul.f32 %v1706, %v1690
        %v1709 = vsub.f32 0.0, %v1681
        %v1710 = vsub.f32 0.0, %v1682
        %v1711 = vmul.f32 %v1709, %v1681
        %v1712 = vmul.f32 %v1710, %v1682
        %v1713 = vmul.f32 %v1711, 1.442695
        %v1714 = vpow.pop %v1713
        %v1715 = vmul.f32 %v1712, 1.442695
        %v1716 = vpow.pop %v1715
        %v1717 = vmul.f32 %v1707, %v1714
        %v1718 = vmul.f32 %v1708, %v1716
        %v1719 = vsub.f32 1.0, %v1717
        %v1720 = vsub.f32 1.0, %v1718
        %v1721 = vmul.f32 %v1679, %v1719
        %v1722 = vmul.f32 %v1680, %v1720
        %v1723 = vadd.f32 %v1721, 1.0
        %v1724 = vadd.f32 %v1722, 1.0
        %v1725 = vmul.f32 %v1673, %v1723
        %v1726 = vmul.f32 %v1674, %v1724
        %v1727 = vlaneseq
        %v1728 = vshrl.u32 %v1727, 7
        %v1729 = vsub.s32 0, %v1728
        %v1730 = vrot.slane %v469, %v1729
        %v1732 = vsel %vm847, %v1725, 0
        %v1735 = vsel %vm847, %v1726, 0
        %v1738 = vsel %vm847, %v491, 0
        %v1741 = vsel %vm847, %v492, 0
        %v1744 = vsel %vm847, %v493, 0
        %v1747 = vsel %vm847, %v494, 0
        %1749 = vmatprep.subr.mxu0 0.0
        %1750 = vmatpush1.xpose.msra.mxu0 0.0
        %1751 = vmatprep.subr.mxu0 0.0
        %1752 = vmatpush1.xpose.msra.mxu0 0.0
        %1753 = vmatprep.subr.mxu0 0.0
        %1754 = vmatpush1.xpose.msra.mxu0 0.0
        %1755 = vmatprep.subr.mxu0 0.0
        %1756 = vmatpush1.xpose.msra.mxu0 0.0
        %1757 = vmatprep.subr.mxu0 0.0
        %1758 = vmatpush1.xpose.msra.mxu0 0.0
        %1759 = vmatprep.subr.mxu0 0.0
        %1760 = vmatpush1.xpose.msra.mxu0 0.0
        %1761 = vmatprep.subr.mxu0 0.0
        %1762 = vmatpush1.xpose.msra.mxu0 0.0
        %1763 = vmatprep.subr.mxu0 0.0
        %1764 = vmatpush1.xpose.msra.mxu0 0.0
        %1765 = vmatprep.subr.mxu0 0.0
        %1766 = vmatpush1.xpose.msra.mxu0 0.0
        %1767 = vmatprep.subr.mxu0 0.0
        %1768 = vmatpush1.xpose.msra.mxu0 0.0
        %1769 = vmatprep.subr.mxu0 0.0
        %1770 = vmatpush1.xpose.msra.mxu0 0.0
        %1771 = vmatprep.subr.mxu0 0.0
        %1772 = vmatpush1.xpose.msra.mxu0 0.0
        %1773 = vmatprep.subr.mxu0 0.0
        %1774 = vmatpush1.xpose.msra.mxu0 %v1747
        %1775 = vmatprep.subr.mxu0 0.0
        %1776 = vmatpush1.xpose.msra.mxu0 %v1744
        %1777 = vmatprep.subr.mxu0 0.0
        %1778 = vmatpush1.xpose.msra.mxu0 %v1741
        %1779 = vmatprep.subr.mxu0 0.0
        %1780 = vmatpush1.xpose.msra.mxu0 %v1738
        %1781 = vmatprep.subr.mxu0 0.0
        %1782 = vmatpush2.xpose.msra.mxu0 0.0
        %1783 = vmatprep.subr.mxu0 0.0
        %1784 = vmatpush2.xpose.msra.mxu0 0.0
        %1785 = vmatprep.subr.mxu0 0.0
        %1786 = vmatpush2.xpose.msra.mxu0 0.0
        %1787 = vmatprep.subr.mxu0 0.0
        %1788 = vmatpush2.xpose.msra.mxu0 0.0
        %1789 = vmatprep.subr.mxu0 0.0
        %1790 = vmatpush2.xpose.msra.mxu0 0.0
        %1791 = vmatprep.subr.mxu0 0.0
        %1792 = vmatpush2.xpose.msra.mxu0 0.0
        %1793 = vmatprep.subr.mxu0 0.0
        %1794 = vmatpush2.xpose.msra.mxu0 0.0
        %1795 = vmatprep.subr.mxu0 0.0
        %1796 = vmatpush2.xpose.msra.mxu0 0.0
        %1797 = vmatprep.subr.mxu0 0.0
        %1798 = vmatpush2.xpose.msra.mxu0 0.0
        %1799 = vmatprep.subr.mxu0 0.0
        %1800 = vmatpush2.xpose.msra.mxu0 0.0
        %1801 = vmatprep.subr.mxu0 0.0
        %1802 = vmatpush2.xpose.msra.mxu0 0.0
        %1803 = vmatprep.subr.mxu0 0.0
        %1804 = vmatpush2.xpose.msra.mxu0 0.0
        %1805 = vmatprep.subr.mxu0 0.0
        %1806 = vmatpush2.xpose.msra.mxu0 0.0
        %1807 = vmatprep.subr.mxu0 0.0
        %1808 = vmatpush2.xpose.msra.mxu0 0.0
        %1809 = vmatprep.subr.mxu0 0.0
        %1810 = vmatpush2.xpose.msra.mxu0 0.0
        %1811 = vmatprep.subr.mxu0 0.0
        %1812 = vmatpush2.xpose.msra.mxu0 0.0
        %1813 = vmatprep.mubr.f32.mxu0 0.0
        %1814 = vmatmul.mubr.f32.gmra.mxu0 %v1732
        %v1815 = vpop.f32.mrf.mxu0
        %v1816 = vadd.f32 %v1730, %v1815
        %v1817 = vpop.f32.mrf.mxu0
        %1818 = vmatprep.mubr.f32.mxu0 0.0
        %1819 = vmatmul.mubr.f32.gmra.mxu0 %v1735
        %v1820 = vpop.f32.mrf.mxu0
        %v1821 = vadd.f32 %v1730, %v1820
        %v1822 = vpop.f32.mrf.mxu0
        %1823 = vdwg.mxu0
        %v1824 = vadd.f32 %v1524, %v1816
        %v1825 = vadd.f32 %v1525, %v1821
        %1826 = vst.msk [vmem:[#allocation2] sm:$0xff] %vm495, %v1824
        %1827 = vst.msk [vmem:[#allocation2 + $0x8] sm:$0xff] %vm495, %v1825
        %p1828 = scmp.eq.s32.totalorder %s22, 1
        // Predicated region
        $region65: #{tpu_custom_call.1} parent=59 // pred_check
          %p1829 = pneg %p1828
        $region66: #{tpu_custom_call.1} parent=59 // pred_check_branch
          %1831 = sbr.rel (%p1829) target = $region68
        $region67: #{tpu_custom_call.1} parent=59 // pred_region
          %v1832 = vld [vmem:[%s9] sm:$0x3]
          %v1833 = vsel %vm495, %v1824, 0.0
          %1834 = vadd.xlane.f32.xlu0 %v1833
          %v1835 = vpop.xlane.xlu0 %1834
          %v1836 = vsel %vm495, %v1825, 0.0
          %1837 = vadd.xlane.f32.xlu0 %v1836
          %v1838 = vpop.xlane.xlu0 %1837
          %v1839 = vmul.f32 %v1835, %v502
          %v1840 = vmul.f32 %v1838, %v502
          %v1841 = vsub.f32 %v1824, %v1839
          %v1842 = vsub.f32 %v1825, %v1840
          %v1843 = vmul.f32 %v1841, %v1841
          %v1844 = vmul.f32 %v1842, %v1842
          %v1845 = vsel %vm495, %v1843, 0.0
          %1846 = vadd.xlane.f32.xlu0 %v1845
          %v1847 = vpop.xlane.xlu0 %1846
          %v1848 = vsel %vm495, %v1844, 0.0
          %1849 = vadd.xlane.f32.xlu0 %v1848
          %v1850 = vpop.xlane.xlu0 %1849
          %v1851 = vmul.f32 %v1847, %v502
          %v1852 = vmul.f32 %v1850, %v502
          %v1853 = vadd.f32 %v1851, 1e-05
          %v1854 = vadd.f32 %v1852, 1e-05
          %v1855 = vrsqrt.pop %v1853
          %v1856 = vrsqrt.pop %v1854
          %v1857 = vmul.f32 %v1841, %v1855
          %v1858 = vmul.f32 %v1842, %v1856
          %v1859 = vlaneseq
          %v1860 = vshrl.u32 %v1859, 7
          %v1861 = vsub.s32 0, %v1860
          %v1862 = vrot.slane %v1832, %v1861
          %v1863 = vmul.f32 %v1857, %v1862
          %v1864 = vmul.f32 %v1858, %v1862
          %v1865 = vlaneseq
          %v1866 = vshrl.u32 %v1865, 7
          %v1867 = vsub.s32 1, %v1866
          %v1868 = vrot.slane %v1832, %v1867
          %v1869 = vadd.f32 %v1863, %v1868
          %v1870 = vadd.f32 %v1864, %v1868
          %1871 = vst.msk [vmem:[#allocation3] sm:$0xff] %vm495, %v1869
          %1872 = vst.msk [vmem:[#allocation3 + $0x8] sm:$0xff] %vm495, %v1870
        $region68: #{tpu_custom_call.1} parent=59 // pred_fallthru
          _
        // Predicated region
        $region69: #{tpu_custom_call.1} parent=59 // pred_check
          %p1873 = pneg %p280
        $region70: #{tpu_custom_call.1} parent=59 // pred_check_branch
          %1875 = sbr.rel (%p1873) target = $region72
        $region71: #{tpu_custom_call.1} parent=59 // pred_region
          %s1877 = ssub.s32 256, 256
          %1878 = vsyncadd [#allocation4], %s1877
          %s1879 = sshll.u32 [#allocation3], 4
          %s1880 = int_to_ptr.vmem [resolvable:$true] %s1879
          %1885 = dma.vmem_to_hbm [thread:$0]  %s1880, 256, %s10, [#allocation4], 128, 128, 8
        $region72: #{tpu_custom_call.1} parent=59 // pred_fallthru
          _
        // Predicated region
        $region73: #{tpu_custom_call.1} parent=59 // pred_check
          %p1886 = pneg %p280
        $region74: #{tpu_custom_call.1} parent=59 // pred_check_branch
          %1888 = sbr.rel (%p1886) target = $region76
        $region75: #{tpu_custom_call.1} parent=59 // pred_region
          %1889 = dma.done [#allocation4], 256
        $region76: #{tpu_custom_call.1} parent=59 // pred_fallthru
          _
      $region60: #{tpu_custom_call.1} parent=5 // pred_fallthru
        _
      %p1890 = scmp.le.s32.totalorder 2, %s17
      // Predicated region
      $region77: #{tpu_custom_call.1} parent=5 // pred_check
        %p1891 = pneg %p1890
      $region78: #{tpu_custom_call.1} parent=5 // pred_check_branch
        %1893 = sbr.rel (%p1891) target = $region80
      $region79: #{tpu_custom_call.1} parent=5 // pred_region
        %s1894 = ssub.s32 %s17, 2
      $region80: #{tpu_custom_call.1} parent=5 // pred_fallthru
        _
    $region6: #{tpu_custom_call.1} parent=1 // loop_footer
      %s21 = sadd.s32 1, %s17
    $region7: #{tpu_custom_call.1} parent=1 // loop_footer_branch
      %16 = sbr.rel target = $region3
    $region8: #{tpu_custom_call.1} parent=1 // loop_exit
      _
    %1895 = vsyncpa [#allocation4], 1
    %s1896 = scalar_lea.sflag [#allocation4], 1
    %1897 = vsyncpa %s1896, 1

</llo_original>
